<compile_context>
chip_gen: v5e
topology: v5e:2x2
jax: 0.10.0
libtpu: 0.0.40
codegen_flags: <defaults>
</compile_context>

<pallas_src>
import functools

import jax
import jax.numpy as jnp
from jax import lax
from jax.experimental import pallas as pl
from jax.experimental.pallas import tpu as pltpu


def _round_up(x, m):
    return (x + m - 1) // m * m


def _char_decoder_kernel(emb_ref, h0_ref, c0_ref, wih_ref, whh_ref, bg_ref,
                         wout_ref, bout_ref,
                         score_ref, hout_ref, cout_ref,
                         gx_sc, h_sc, c_sc,
                         *, t_actual, masked):
    tci = pl.program_id(1)                       # time-chunk index ("arbitrary")
    Tc, Bb, E = emb_ref.shape
    H = h_sc.shape[-1]
    Vp = score_ref.shape[-1]

    # Load recurrent state from dec_init at the first time-chunk of this batch
    # chunk (the t axis restarts at 0 for every batch chunk).
    @pl.when(tci == 0)
    def _init():
        h_sc[...] = h0_ref[...]
        c_sc[...] = c0_ref[...]

    # ---- Phase 1: batched input projection for the whole T-chunk (one MXU
    # matmul); gate biases (b_ih + b_hh) folded in once per chunk.
    x_all = emb_ref[...].reshape(Tc * Bb, E)      # bf16 (cast in the wrapper)
    gx_sc[...] = (jnp.dot(x_all, wih_ref[...], preferred_element_type=jnp.float32)
                  + bg_ref[...])

    # Loop-invariant loads / broadcasts hoisted out of the recurrence.
    whh = whh_ref[...]                            # (H, 4H)  bf16
    wout = wout_ref[...]                          # (H, Vp)  bf16
    bout = jnp.broadcast_to(bout_ref[...], (Bb, Vp))   # (Bb, Vp) f32

    # ---- Phase 2: serial LSTM recurrence. h/c are fori_loop carries (vregs)
    # rather than per-step VMEM round-trips; the per-step output projection is
    # independent MXU/VPU work that fills the recurrence's latency bubbles.
    # PyTorch gate order: i, f, g, o.
    def step(i, carry):
        h, c = carry
        row0 = pl.multiple_of(i * Bb, Bb)
        gates = gx_sc[pl.ds(row0, Bb), :] + jnp.dot(
            h.astype(jnp.bfloat16), whh, preferred_element_type=jnp.float32)
        # TODO(synk): for H < 128 the four sub-128-lane slices below sit on the
        # serial critical path; padding H to 128 would trade them for extra EUP work.
        i_g = jax.nn.sigmoid(gates[:, 0 * H:1 * H])
        f_g = jax.nn.sigmoid(gates[:, 1 * H:2 * H])
        g_g = jnp.tanh(gates[:, 2 * H:3 * H])
        o_g = jax.nn.sigmoid(gates[:, 3 * H:4 * H])
        c_new = f_g * c + i_g * g_g
        h_new = o_g * jnp.tanh(c_new)
        if masked:   # traced only when T was padded up to a multiple of Tc
            valid = (tci * Tc + i) < t_actual
            c_new = jnp.where(valid, c_new, c)
            h_new = jnp.where(valid, h_new, h)
        # Interleaved output projection: store this step's logits directly
        # (lane-dense Vp -> unmasked vst), independent of the recurrence chain.
        score_ref[i] = (jnp.dot(h_new.astype(jnp.bfloat16), wout,
                                preferred_element_type=jnp.float32)
                        + bout).astype(score_ref.dtype)
        return h_new, c_new

    h_fin, c_fin = lax.fori_loop(0, Tc, step, (h_sc[...], c_sc[...]),
                                 unroll=(True if Tc <= 32 else 8))

    # Persist state for the next time-chunk; emit (h_n, c_n) every chunk
    # (cheap insurance; only the last chunk's value reaches HBM).
    h_sc[...] = h_fin
    c_sc[...] = c_fin
    hout_ref[...] = h_fin
    cout_ref[...] = c_fin


def char_decoder_forward(x, dec_init, params, *, t_chunk=64, b_chunk=None):
    """x: (T, B) int32; dec_init: (h0, c0) each (1, B, H) float32."""
    emb_table = params["embedding"]                     # (V, E), padding row zeroed
    w_ih_t = params["w_ih_t"].astype(jnp.bfloat16)      # (E, 4H) bf16 MXU operand
    w_hh_t = params["w_hh_t"].astype(jnp.bfloat16)      # (H, 4H) bf16 MXU operand
    b_gates = params["b_gates"]                         # (1, 4H) == b_ih + b_hh
    w_out_t = params["w_out_t"]                         # (H, V)
    b_out = params["b_out"]                             # (1, V)

    T, B = x.shape
    E = emb_table.shape[1]
    H = w_hh_t.shape[0]
    V = w_out_t.shape[1]

    # Batch chunk: as wide as possible (every matmul has M = Bb), capped at 128.
    Bp8 = _round_up(B, 8)
    if b_chunk is None:
        Bb = min(Bp8, 128)
        # Keep >= 2 batch chunks when it costs no extra padding so the leading
        # "parallel" axis can shard across TensorCores (v7x megacore).
        if Bp8 // Bb < 2 and Bp8 % 32 == 0 and Bp8 // 2 >= 64:
            Bb = Bp8 // 2
    else:
        Bb = _round_up(b_chunk, 8)
    Bp = _round_up(B, Bb)

    Tc = min(t_chunk, T)                  # time steps per chunk
    TP = _round_up(T, Tc)
    Vp = _round_up(V, 128)                # lane-dense logits

    # Glue: embedding gather + padding in plain JAX; bf16 halves the HBM round
    # trip of the gathered activations.
    # TODO(synk): fuse the gather in-kernel via scalar-prefetched indices to
    # skip the (T, B, E) HBM round trip entirely.
    emb = jnp.take(emb_table, x, axis=0).astype(jnp.bfloat16)         # (T, B, E)
    emb = jnp.pad(emb, ((0, TP - T), (0, Bp - B), (0, 0)))
    h0 = jnp.pad(dec_init[0][0], ((0, Bp - B), (0, 0)))               # (Bp, H)
    c0 = jnp.pad(dec_init[1][0], ((0, Bp - B), (0, 0)))
    w_out_p = jnp.pad(w_out_t, ((0, 0), (0, Vp - V))).astype(jnp.bfloat16)  # (H, Vp)
    b_out_p = jnp.pad(b_out, ((0, 0), (0, Vp - V)))                          # (1, Vp)

    nb = Bp // Bb
    nt = TP // Tc

    # VMEM budget (double-buffered blocks + scratch): raise the scoped limit
    # above v5e's 16 MiB default while staying inside v7x's 64 MiB physical.
    vmem_bytes = (
        2 * (Tc * Bb * E * 2)                                    # emb blocks (bf16)
        + 2 * (Tc * Bb * Vp * 4)                                 # score blocks (f32)
        + 2 * 4 * (Bb * H * 4)                                   # h0/c0/h_n/c_n blocks
        + 2 * (E * 4 * H * 2 + H * 4 * H * 2 + 4 * H * 4
               + H * Vp * 2 + Vp * 4)                            # weights / biases
        + Tc * Bb * 4 * H * 4                                    # gx scratch
        + 2 * (Bb * H * 4)                                       # h/c state scratch
    )
    vmem_limit = int(min(128 * 1024 * 1024,
                         max(32 * 1024 * 1024, int(vmem_bytes * 1.25))))

    kernel = functools.partial(_char_decoder_kernel, t_actual=T, masked=(TP != T))

    grid_spec = pltpu.PrefetchScalarGridSpec(
        num_scalar_prefetch=0,
        grid=(nb, nt),
        in_specs=[
            pl.BlockSpec((Tc, Bb, E), lambda b, t: (t, b, 0)),    # emb chunk (bf16)
            pl.BlockSpec((Bb, H), lambda b, t: (b, 0)),           # h0
            pl.BlockSpec((Bb, H), lambda b, t: (b, 0)),           # c0
            pl.BlockSpec((E, 4 * H), lambda b, t: (0, 0)),        # W_ih^T (bf16)
            pl.BlockSpec((H, 4 * H), lambda b, t: (0, 0)),        # W_hh^T (bf16)
            pl.BlockSpec((1, 4 * H), lambda b, t: (0, 0)),        # b_ih + b_hh
            pl.BlockSpec((H, Vp), lambda b, t: (0, 0)),           # W_out^T (bf16, padded)
            pl.BlockSpec((1, Vp), lambda b, t: (0, 0)),           # b_out (padded)
        ],
        out_specs=[
            pl.BlockSpec((Tc, Bb, Vp), lambda b, t: (t, b, 0)),   # score chunk
            pl.BlockSpec((Bb, H), lambda b, t: (b, 0)),           # h_n
            pl.BlockSpec((Bb, H), lambda b, t: (b, 0)),           # c_n
        ],
        scratch_shapes=[
            pltpu.VMEM((Tc * Bb, 4 * H), jnp.float32),            # precomputed x-gates
            pltpu.VMEM((Bb, H), jnp.float32),                     # h state (across t-chunks)
            pltpu.VMEM((Bb, H), jnp.float32),                     # c state (across t-chunks)
        ],
    )

    score_p, h_n, c_n = pl.pallas_call(
        kernel,
        out_shape=(
            jax.ShapeDtypeStruct((TP, Bp, Vp), jnp.float32),
            jax.ShapeDtypeStruct((Bp, H), jnp.float32),
            jax.ShapeDtypeStruct((Bp, H), jnp.float32),
        ),
        grid_spec=grid_spec,
        compiler_params=pltpu.CompilerParams(
            dimension_semantics=("parallel", "arbitrary"),
            vmem_limit_bytes=vmem_limit),
    )(emb, h0, c0, w_ih_t, w_hh_t, b_gates, w_out_p, b_out_p)

    score = score_p[:T, :B, :V]
    return score, (h_n[None, :B, :], c_n[None, :B, :])


def _reference_forward(x, dec_init, params):
    """Pure-JAX f32 reference matching PyTorch nn.LSTM semantics (gate order i,f,g,o)."""
    emb = jnp.take(params["embedding"], x, axis=0)
    w_ih_t, w_hh_t = params["w_ih_t"], params["w_hh_t"]
    b = params["b_gates"][0]
    w_out_t, b_out = params["w_out_t"], params["b_out"][0]
    H = w_hh_t.shape[0]

    def step(carry, x_t):
        h, c = carry
        gates = x_t @ w_ih_t + h @ w_hh_t + b
        i = jax.nn.sigmoid(gates[:, :H])
        f = jax.nn.sigmoid(gates[:, H:2 * H])
        g = jnp.tanh(gates[:, 2 * H:3 * H])
        o = jax.nn.sigmoid(gates[:, 3 * H:])
        c = f * c + i * g
        h = o * jnp.tanh(c)
        return (h, c), h @ w_out_t + b_out

    (h_n, c_n), score = jax.lax.scan(step, (dec_init[0][0], dec_init[1][0]), emb)
    return score, (h_n[None], c_n[None])


def init_params(key, num_embeddings, hidden_size, padding_idx, embedding_dim):
    ks = jax.random.split(key, 7)
    scale = 0.1
    emb = scale * jax.random.normal(ks[0], (num_embeddings, embedding_dim), jnp.float32)
    emb = emb.at[padding_idx].set(0.0)  # nn.Embedding padding_idx row is zero
    w_ih = scale * jax.random.normal(ks[1], (4 * hidden_size, embedding_dim), jnp.float32)
    w_hh = scale * jax.random.normal(ks[2], (4 * hidden_size, hidden_size), jnp.float32)
    b_ih = scale * jax.random.normal(ks[3], (4 * hidden_size,), jnp.float32)
    b_hh = scale * jax.random.normal(ks[4], (4 * hidden_size,), jnp.float32)
    w_out = scale * jax.random.normal(ks[5], (num_embeddings, hidden_size), jnp.float32)
    b_out = scale * jax.random.normal(ks[6], (num_embeddings,), jnp.float32)
    return {
        "embedding": emb,
        "w_ih_t": w_ih.T,                       # (E, 4H)
        "w_hh_t": w_hh.T,                       # (H, 4H)
        "b_gates": (b_ih + b_hh)[None, :],      # (1, 4H)
        "w_out_t": w_out.T,                     # (H, V)
        "b_out": b_out[None, :],                # (1, V)
    }


if __name__ == "__main__":
    # Small deterministic example.
    num_embeddings = 96   # V  (padded to 128 inside the kernel path)
    hidden_size = 32      # H
    embedding_dim = 32    # E
    padding_idx = 0
    T, B = 8, 4           # B padded to 8 inside the kernel path

    key = jax.random.PRNGKey(0)
    k_params, k_x, k_h, k_c = jax.random.split(key, 4)
    params = init_params(k_params, num_embeddings, hidden_size, padding_idx, embedding_dim)

    x = jax.random.randint(k_x, (T, B), 0, num_embeddings, dtype=jnp.int32)
    h0 = 0.1 * jax.random.normal(k_h, (1, B, hidden_size), jnp.float32)
    c0 = 0.1 * jax.random.normal(k_c, (1, B, hidden_size), jnp.float32)
    dec_init = (h0, c0)

    score, (h_n, c_n) = char_decoder_forward(x, dec_init, params)
    jax.block_until_ready(score)
    jax.block_until_ready(h_n)
    jax.block_until_ready(c_n)

    # Sanity check against a pure-f32 JAX reference of the same math.
    # Tolerance accounts for bf16 MXU operands (f32 accumulation) on the
    # embedding/input/recurrence/output projections.
    score_ref, (h_ref, c_ref) = _reference_forward(x, dec_init, params)
    assert jnp.allclose(score, score_ref, atol=1e-2, rtol=1e-2)
    assert jnp.allclose(h_n, h_ref, atol=1e-2, rtol=1e-2)
    assert jnp.allclose(c_n, c_ref, atol=1e-2, rtol=1e-2)

    print("KERNEL_OK")
</pallas_src>

<mosaic_0001>
module attributes {stable_mosaic.version = 11 : i64} {
  func.func @_char_decoder_kernel(%arg0: i32, %arg1: i32, %arg2: memref<8x8x32xbf16, #tpu.memory_space<vmem>>, %arg3: memref<8x32xf32, #tpu.memory_space<vmem>>, %arg4: memref<8x32xf32, #tpu.memory_space<vmem>>, %arg5: memref<32x128xbf16, #tpu.memory_space<vmem>>, %arg6: memref<32x128xbf16, #tpu.memory_space<vmem>>, %arg7: memref<1x128xf32, #tpu.memory_space<vmem>>, %arg8: memref<32x128xbf16, #tpu.memory_space<vmem>>, %arg9: memref<1x128xf32, #tpu.memory_space<vmem>>, %arg10: memref<8x8x128xf32, #tpu.memory_space<vmem>>, %arg11: memref<8x32xf32, #tpu.memory_space<vmem>>, %arg12: memref<8x32xf32, #tpu.memory_space<vmem>>, %arg13: memref<64x128xf32, #tpu.memory_space<vmem>>, %arg14: memref<8x32xf32, #tpu.memory_space<vmem>>, %arg15: memref<8x32xf32, #tpu.memory_space<vmem>>) attributes {dimension_semantics = [#tpu.dimension_semantics<parallel>, #tpu.dimension_semantics<arbitrary>], iteration_bounds = array<i64: 1, 1>, scalar_prefetch = 0 : i64, scratch_operands = 3 : i64, tpu.core_type = #tpu.core_type<tc>, window_params = [{transform_indices = @transform_0, window_bounds = array<i64: 8, 8, 32>}, {transform_indices = @transform_1, window_bounds = array<i64: 8, 32>}, {transform_indices = @transform_2, window_bounds = array<i64: 8, 32>}, {pipeline_mode = #tpu.pipeline_mode<synchronous>, transform_indices = @transform_3, window_bounds = array<i64: 32, 128>}, {pipeline_mode = #tpu.pipeline_mode<synchronous>, transform_indices = @transform_4, window_bounds = array<i64: 32, 128>}, {pipeline_mode = #tpu.pipeline_mode<synchronous>, transform_indices = @transform_5, window_bounds = array<i64: 1, 128>}, {pipeline_mode = #tpu.pipeline_mode<synchronous>, transform_indices = @transform_6, window_bounds = array<i64: 32, 128>}, {pipeline_mode = #tpu.pipeline_mode<synchronous>, transform_indices = @transform_7, window_bounds = array<i64: 1, 128>}, {transform_indices = @transform_8, window_bounds = array<i64: 8, 8, 128>}, {transform_indices = @transform_9, window_bounds = array<i64: 8, 32>}, {transform_indices = @transform_10, window_bounds = array<i64: 8, 32>}]} {
    %c0_i32 = arith.constant 0 : i32
    %0 = arith.cmpi eq, %arg1, %c0_i32 : i32
    %1 = arith.extui %0 : i1 to i32
    %c0_i32_0 = arith.constant 0 : i32
    %2 = arith.cmpi ne, %1, %c0_i32_0 : i32
    scf.if %2 {
      %c0_100 = arith.constant 0 : index
      %c0_101 = arith.constant 0 : index
      %334 = vector.load %arg3[%c0_100, %c0_101] : memref<8x32xf32, #tpu.memory_space<vmem>>, vector<8x32xf32>
      %c0_102 = arith.constant 0 : index
      %c0_103 = arith.constant 0 : index
      %335 = vector.load %arg14[%c0_102, %c0_103] : memref<8x32xf32, #tpu.memory_space<vmem>>, vector<8x32xf32>
      tpu.vector_store %arg14[%c0_102, %c0_103], %334 {strides = array<i32>} : memref<8x32xf32, #tpu.memory_space<vmem>>, vector<8x32xf32>,
      %c0_104 = arith.constant 0 : index
      %c0_105 = arith.constant 0 : index
      %336 = vector.load %arg4[%c0_104, %c0_105] : memref<8x32xf32, #tpu.memory_space<vmem>>, vector<8x32xf32>
      %c0_106 = arith.constant 0 : index
      %c0_107 = arith.constant 0 : index
      %337 = vector.load %arg15[%c0_106, %c0_107] : memref<8x32xf32, #tpu.memory_space<vmem>>, vector<8x32xf32>
      tpu.vector_store %arg15[%c0_106, %c0_107], %336 {strides = array<i32>} : memref<8x32xf32, #tpu.memory_space<vmem>>, vector<8x32xf32>,
    } else {
    }
    %c0 = arith.constant 0 : index
    %c0_1 = arith.constant 0 : index
    %c0_2 = arith.constant 0 : index
    %3 = vector.load %arg2[%c0, %c0_1, %c0_2] : memref<8x8x32xbf16, #tpu.memory_space<vmem>>, vector<8x8x32xbf16>
    %4 = vector.shape_cast %3 : vector<8x8x32xbf16> to vector<64x32xbf16>
    %c0_3 = arith.constant 0 : index
    %c0_4 = arith.constant 0 : index
    %5 = vector.load %arg5[%c0_3, %c0_4] : memref<32x128xbf16, #tpu.memory_space<vmem>>, vector<32x128xbf16>
    %cst = arith.constant dense<0.000000e+00> : vector<64x128xf32>
    %6 = tpu.matmul %4, %5, %cst {dimension_numbers = #tpu.dot_dimension_numbers<[1], [0], [0], [1], [0, 0, 1, 1], [], []>} : vector<64x32xbf16>, vector<32x128xbf16>, vector<64x128xf32> -> vector<64x128xf32>
    %c0_5 = arith.constant 0 : index
    %c0_6 = arith.constant 0 : index
    %7 = vector.load %arg7[%c0_5, %c0_6] : memref<1x128xf32, #tpu.memory_space<vmem>>, vector<1x128xf32>
    %8 = vector.broadcast %7 : vector<1x128xf32> to vector<64x128xf32>
    %9 = arith.addf %6, %8 : vector<64x128xf32>
    %c0_7 = arith.constant 0 : index
    %c0_8 = arith.constant 0 : index
    %10 = vector.load %arg13[%c0_7, %c0_8] : memref<64x128xf32, #tpu.memory_space<vmem>>, vector<64x128xf32>
    tpu.vector_store %arg13[%c0_7, %c0_8], %9 {strides = array<i32>} : memref<64x128xf32, #tpu.memory_space<vmem>>, vector<64x128xf32>,
    %c0_9 = arith.constant 0 : index
    %c0_10 = arith.constant 0 : index
    %11 = vector.load %arg6[%c0_9, %c0_10] : memref<32x128xbf16, #tpu.memory_space<vmem>>, vector<32x128xbf16>
    %c0_11 = arith.constant 0 : index
    %c0_12 = arith.constant 0 : index
    %12 = vector.load %arg8[%c0_11, %c0_12] : memref<32x128xbf16, #tpu.memory_space<vmem>>, vector<32x128xbf16>
    %c0_13 = arith.constant 0 : index
    %c0_14 = arith.constant 0 : index
    %13 = vector.load %arg9[%c0_13, %c0_14] : memref<1x128xf32, #tpu.memory_space<vmem>>, vector<1x128xf32>
    %14 = vector.shape_cast %13 : vector<1x128xf32> to vector<1x128xf32>
    %15 = vector.broadcast %14 : vector<1x128xf32> to vector<8x128xf32>
    %c0_15 = arith.constant 0 : index
    %c0_16 = arith.constant 0 : index
    %16 = vector.load %arg14[%c0_15, %c0_16] : memref<8x32xf32, #tpu.memory_space<vmem>>, vector<8x32xf32>
    %c0_17 = arith.constant 0 : index
    %c0_18 = arith.constant 0 : index
    %17 = vector.load %arg15[%c0_17, %c0_18] : memref<8x32xf32, #tpu.memory_space<vmem>>, vector<8x32xf32>
    %c0_i32_19 = arith.constant 0 : i32
    %c8_i32 = arith.constant 8 : i32
    %18 = arith.muli %c0_i32_19, %c8_i32 : i32
    %19 = tpu.assume_multiple %18, 8 : i32
    %20 = arith.index_cast %19 : i32 to index
    %c0_20 = arith.constant 0 : index
    %21 = vector.load %arg13[%20, %c0_20] : memref<64x128xf32, #tpu.memory_space<vmem>>, vector<8x128xf32>
    %22 = arith.truncf %16 : vector<8x32xf32> to vector<8x32xbf16>
    %cst_21 = arith.constant dense<0.000000e+00> : vector<8x128xf32>
    %23 = tpu.matmul %22, %11, %cst_21 {dimension_numbers = #tpu.dot_dimension_numbers<[1], [0], [0], [1], [0, 0, 1, 1], [], []>} : vector<8x32xbf16>, vector<32x128xbf16>, vector<8x128xf32> -> vector<8x128xf32>
    %24 = arith.addf %21, %23 : vector<8x128xf32>
    %25 = vector.extract_strided_slice %24 {offsets = [0, 0], sizes = [8, 32], strides = [1, 1]} : vector<8x128xf32> to vector<8x32xf32>
    %26 = arith.negf %25 : vector<8x32xf32>
    %27 = math.exp %26 : vector<8x32xf32>
    %cst_22 = arith.constant 1.000000e+00 : f32
    %28 = vector.broadcast %cst_22 : f32 to vector<8x32xf32>
    %29 = arith.addf %28, %27 : vector<8x32xf32>
    %30 = arith.divf %28, %29 : vector<8x32xf32>
    %31 = vector.extract_strided_slice %24 {offsets = [0, 32], sizes = [8, 32], strides = [1, 1]} : vector<8x128xf32> to vector<8x32xf32>
    %32 = arith.negf %31 : vector<8x32xf32>
    %33 = math.exp %32 : vector<8x32xf32>
    %cst_23 = arith.constant 1.000000e+00 : f32
    %34 = vector.broadcast %cst_23 : f32 to vector<8x32xf32>
    %35 = arith.addf %34, %33 : vector<8x32xf32>
    %36 = arith.divf %34, %35 : vector<8x32xf32>
    %37 = vector.extract_strided_slice %24 {offsets = [0, 64], sizes = [8, 32], strides = [1, 1]} : vector<8x128xf32> to vector<8x32xf32>
    %38 = math.tanh %37 : vector<8x32xf32>
    %39 = vector.extract_strided_slice %24 {offsets = [0, 96], sizes = [8, 32], strides = [1, 1]} : vector<8x128xf32> to vector<8x32xf32>
    %40 = arith.negf %39 : vector<8x32xf32>
    %41 = math.exp %40 : vector<8x32xf32>
    %cst_24 = arith.constant 1.000000e+00 : f32
    %42 = vector.broadcast %cst_24 : f32 to vector<8x32xf32>
    %43 = arith.addf %42, %41 : vector<8x32xf32>
    %44 = arith.divf %42, %43 : vector<8x32xf32>
    %45 = arith.mulf %36, %17 : vector<8x32xf32>
    %46 = arith.mulf %30, %38 : vector<8x32xf32>
    %47 = arith.addf %45, %46 : vector<8x32xf32>
    %48 = math.tanh %47 : vector<8x32xf32>
    %49 = arith.mulf %44, %48 : vector<8x32xf32>
    %50 = arith.truncf %49 : vector<8x32xf32> to vector<8x32xbf16>
    %cst_25 = arith.constant dense<0.000000e+00> : vector<8x128xf32>
    %51 = tpu.matmul %50, %12, %cst_25 {dimension_numbers = #tpu.dot_dimension_numbers<[1], [0], [0], [1], [0, 0, 1, 1], [], []>} : vector<8x32xbf16>, vector<32x128xbf16>, vector<8x128xf32> -> vector<8x128xf32>
    %52 = arith.addf %51, %15 : vector<8x128xf32>
    %53 = arith.index_cast %c0_i32_19 : i32 to index
    %c0_26 = arith.constant 0 : index
    %c0_27 = arith.constant 0 : index
    %54 = vector.load %arg10[%53, %c0_26, %c0_27] : memref<8x8x128xf32, #tpu.memory_space<vmem>>, vector<1x8x128xf32>
    %55 = vector.shape_cast %54 : vector<1x8x128xf32> to vector<8x128xf32>
    %56 = vector.shape_cast %52 : vector<8x128xf32> to vector<1x8x128xf32>
    tpu.vector_store %arg10[%53, %c0_26, %c0_27], %56 {strides = array<i32>} : memref<8x8x128xf32, #tpu.memory_space<vmem>>, vector<1x8x128xf32>,
    %c1_i32 = arith.constant 1 : i32
    %c8_i32_28 = arith.constant 8 : i32
    %57 = arith.muli %c1_i32, %c8_i32_28 : i32
    %58 = tpu.assume_multiple %57, 8 : i32
    %59 = arith.index_cast %58 : i32 to index
    %c0_29 = arith.constant 0 : index
    %60 = vector.load %arg13[%59, %c0_29] : memref<64x128xf32, #tpu.memory_space<vmem>>, vector<8x128xf32>
    %61 = arith.truncf %49 : vector<8x32xf32> to vector<8x32xbf16>
    %cst_30 = arith.constant dense<0.000000e+00> : vector<8x128xf32>
    %62 = tpu.matmul %61, %11, %cst_30 {dimension_numbers = #tpu.dot_dimension_numbers<[1], [0], [0], [1], [0, 0, 1, 1], [], []>} : vector<8x32xbf16>, vector<32x128xbf16>, vector<8x128xf32> -> vector<8x128xf32>
    %63 = arith.addf %60, %62 : vector<8x128xf32>
    %64 = vector.extract_strided_slice %63 {offsets = [0, 0], sizes = [8, 32], strides = [1, 1]} : vector<8x128xf32> to vector<8x32xf32>
    %65 = arith.negf %64 : vector<8x32xf32>
    %66 = math.exp %65 : vector<8x32xf32>
    %cst_31 = arith.constant 1.000000e+00 : f32
    %67 = vector.broadcast %cst_31 : f32 to vector<8x32xf32>
    %68 = arith.addf %67, %66 : vector<8x32xf32>
    %69 = arith.divf %67, %68 : vector<8x32xf32>
    %70 = vector.extract_strided_slice %63 {offsets = [0, 32], sizes = [8, 32], strides = [1, 1]} : vector<8x128xf32> to vector<8x32xf32>
    %71 = arith.negf %70 : vector<8x32xf32>
    %72 = math.exp %71 : vector<8x32xf32>
    %cst_32 = arith.constant 1.000000e+00 : f32
    %73 = vector.broadcast %cst_32 : f32 to vector<8x32xf32>
    %74 = arith.addf %73, %72 : vector<8x32xf32>
    %75 = arith.divf %73, %74 : vector<8x32xf32>
    %76 = vector.extract_strided_slice %63 {offsets = [0, 64], sizes = [8, 32], strides = [1, 1]} : vector<8x128xf32> to vector<8x32xf32>
    %77 = math.tanh %76 : vector<8x32xf32>
    %78 = vector.extract_strided_slice %63 {offsets = [0, 96], sizes = [8, 32], strides = [1, 1]} : vector<8x128xf32> to vector<8x32xf32>
    %79 = arith.negf %78 : vector<8x32xf32>
    %80 = math.exp %79 : vector<8x32xf32>
    %cst_33 = arith.constant 1.000000e+00 : f32
    %81 = vector.broadcast %cst_33 : f32 to vector<8x32xf32>
    %82 = arith.addf %81, %80 : vector<8x32xf32>
    %83 = arith.divf %81, %82 : vector<8x32xf32>
    %84 = arith.mulf %75, %47 : vector<8x32xf32>
    %85 = arith.mulf %69, %77 : vector<8x32xf32>
    %86 = arith.addf %84, %85 : vector<8x32xf32>
    %87 = math.tanh %86 : vector<8x32xf32>
    %88 = arith.mulf %83, %87 : vector<8x32xf32>
    %89 = arith.truncf %88 : vector<8x32xf32> to vector<8x32xbf16>
    %cst_34 = arith.constant dense<0.000000e+00> : vector<8x128xf32>
    %90 = tpu.matmul %89, %12, %cst_34 {dimension_numbers = #tpu.dot_dimension_numbers<[1], [0], [0], [1], [0, 0, 1, 1], [], []>} : vector<8x32xbf16>, vector<32x128xbf16>, vector<8x128xf32> -> vector<8x128xf32>
    %91 = arith.addf %90, %15 : vector<8x128xf32>
    %92 = arith.index_cast %c1_i32 : i32 to index
    %c0_35 = arith.constant 0 : index
    %c0_36 = arith.constant 0 : index
    %93 = vector.load %arg10[%92, %c0_35, %c0_36] : memref<8x8x128xf32, #tpu.memory_space<vmem>>, vector<1x8x128xf32>
    %94 = vector.shape_cast %93 : vector<1x8x128xf32> to vector<8x128xf32>
    %95 = vector.shape_cast %91 : vector<8x128xf32> to vector<1x8x128xf32>
    tpu.vector_store %arg10[%92, %c0_35, %c0_36], %95 {strides = array<i32>} : memref<8x8x128xf32, #tpu.memory_space<vmem>>, vector<1x8x128xf32>,
    %c2_i32 = arith.constant 2 : i32
    %c8_i32_37 = arith.constant 8 : i32
    %96 = arith.muli %c2_i32, %c8_i32_37 : i32
    %97 = tpu.assume_multiple %96, 8 : i32
    %98 = arith.index_cast %97 : i32 to index
    %c0_38 = arith.constant 0 : index
    %99 = vector.load %arg13[%98, %c0_38] : memref<64x128xf32, #tpu.memory_space<vmem>>, vector<8x128xf32>
    %100 = arith.truncf %88 : vector<8x32xf32> to vector<8x32xbf16>
    %cst_39 = arith.constant dense<0.000000e+00> : vector<8x128xf32>
    %101 = tpu.matmul %100, %11, %cst_39 {dimension_numbers = #tpu.dot_dimension_numbers<[1], [0], [0], [1], [0, 0, 1, 1], [], []>} : vector<8x32xbf16>, vector<32x128xbf16>, vector<8x128xf32> -> vector<8x128xf32>
    %102 = arith.addf %99, %101 : vector<8x128xf32>
    %103 = vector.extract_strided_slice %102 {offsets = [0, 0], sizes = [8, 32], strides = [1, 1]} : vector<8x128xf32> to vector<8x32xf32>
    %104 = arith.negf %103 : vector<8x32xf32>
    %105 = math.exp %104 : vector<8x32xf32>
    %cst_40 = arith.constant 1.000000e+00 : f32
    %106 = vector.broadcast %cst_40 : f32 to vector<8x32xf32>
    %107 = arith.addf %106, %105 : vector<8x32xf32>
    %108 = arith.divf %106, %107 : vector<8x32xf32>
    %109 = vector.extract_strided_slice %102 {offsets = [0, 32], sizes = [8, 32], strides = [1, 1]} : vector<8x128xf32> to vector<8x32xf32>
    %110 = arith.negf %109 : vector<8x32xf32>
    %111 = math.exp %110 : vector<8x32xf32>
    %cst_41 = arith.constant 1.000000e+00 : f32
    %112 = vector.broadcast %cst_41 : f32 to vector<8x32xf32>
    %113 = arith.addf %112, %111 : vector<8x32xf32>
    %114 = arith.divf %112, %113 : vector<8x32xf32>
    %115 = vector.extract_strided_slice %102 {offsets = [0, 64], sizes = [8, 32], strides = [1, 1]} : vector<8x128xf32> to vector<8x32xf32>
    %116 = math.tanh %115 : vector<8x32xf32>
    %117 = vector.extract_strided_slice %102 {offsets = [0, 96], sizes = [8, 32], strides = [1, 1]} : vector<8x128xf32> to vector<8x32xf32>
    %118 = arith.negf %117 : vector<8x32xf32>
    %119 = math.exp %118 : vector<8x32xf32>
    %cst_42 = arith.constant 1.000000e+00 : f32
    %120 = vector.broadcast %cst_42 : f32 to vector<8x32xf32>
    %121 = arith.addf %120, %119 : vector<8x32xf32>
    %122 = arith.divf %120, %121 : vector<8x32xf32>
    %123 = arith.mulf %114, %86 : vector<8x32xf32>
    %124 = arith.mulf %108, %116 : vector<8x32xf32>
    %125 = arith.addf %123, %124 : vector<8x32xf32>
    %126 = math.tanh %125 : vector<8x32xf32>
    %127 = arith.mulf %122, %126 : vector<8x32xf32>
    %128 = arith.truncf %127 : vector<8x32xf32> to vector<8x32xbf16>
    %cst_43 = arith.constant dense<0.000000e+00> : vector<8x128xf32>
    %129 = tpu.matmul %128, %12, %cst_43 {dimension_numbers = #tpu.dot_dimension_numbers<[1], [0], [0], [1], [0, 0, 1, 1], [], []>} : vector<8x32xbf16>, vector<32x128xbf16>, vector<8x128xf32> -> vector<8x128xf32>
    %130 = arith.addf %129, %15 : vector<8x128xf32>
    %131 = arith.index_cast %c2_i32 : i32 to index
    %c0_44 = arith.constant 0 : index
    %c0_45 = arith.constant 0 : index
    %132 = vector.load %arg10[%131, %c0_44, %c0_45] : memref<8x8x128xf32, #tpu.memory_space<vmem>>, vector<1x8x128xf32>
    %133 = vector.shape_cast %132 : vector<1x8x128xf32> to vector<8x128xf32>
    %134 = vector.shape_cast %130 : vector<8x128xf32> to vector<1x8x128xf32>
    tpu.vector_store %arg10[%131, %c0_44, %c0_45], %134 {strides = array<i32>} : memref<8x8x128xf32, #tpu.memory_space<vmem>>, vector<1x8x128xf32>,
    %c3_i32 = arith.constant 3 : i32
    %c8_i32_46 = arith.constant 8 : i32
    %135 = arith.muli %c3_i32, %c8_i32_46 : i32
    %136 = tpu.assume_multiple %135, 8 : i32
    %137 = arith.index_cast %136 : i32 to index
    %c0_47 = arith.constant 0 : index
    %138 = vector.load %arg13[%137, %c0_47] : memref<64x128xf32, #tpu.memory_space<vmem>>, vector<8x128xf32>
    %139 = arith.truncf %127 : vector<8x32xf32> to vector<8x32xbf16>
    %cst_48 = arith.constant dense<0.000000e+00> : vector<8x128xf32>
    %140 = tpu.matmul %139, %11, %cst_48 {dimension_numbers = #tpu.dot_dimension_numbers<[1], [0], [0], [1], [0, 0, 1, 1], [], []>} : vector<8x32xbf16>, vector<32x128xbf16>, vector<8x128xf32> -> vector<8x128xf32>
    %141 = arith.addf %138, %140 : vector<8x128xf32>
    %142 = vector.extract_strided_slice %141 {offsets = [0, 0], sizes = [8, 32], strides = [1, 1]} : vector<8x128xf32> to vector<8x32xf32>
    %143 = arith.negf %142 : vector<8x32xf32>
    %144 = math.exp %143 : vector<8x32xf32>
    %cst_49 = arith.constant 1.000000e+00 : f32
    %145 = vector.broadcast %cst_49 : f32 to vector<8x32xf32>
    %146 = arith.addf %145, %144 : vector<8x32xf32>
    %147 = arith.divf %145, %146 : vector<8x32xf32>
    %148 = vector.extract_strided_slice %141 {offsets = [0, 32], sizes = [8, 32], strides = [1, 1]} : vector<8x128xf32> to vector<8x32xf32>
    %149 = arith.negf %148 : vector<8x32xf32>
    %150 = math.exp %149 : vector<8x32xf32>
    %cst_50 = arith.constant 1.000000e+00 : f32
    %151 = vector.broadcast %cst_50 : f32 to vector<8x32xf32>
    %152 = arith.addf %151, %150 : vector<8x32xf32>
    %153 = arith.divf %151, %152 : vector<8x32xf32>
    %154 = vector.extract_strided_slice %141 {offsets = [0, 64], sizes = [8, 32], strides = [1, 1]} : vector<8x128xf32> to vector<8x32xf32>
    %155 = math.tanh %154 : vector<8x32xf32>
    %156 = vector.extract_strided_slice %141 {offsets = [0, 96], sizes = [8, 32], strides = [1, 1]} : vector<8x128xf32> to vector<8x32xf32>
    %157 = arith.negf %156 : vector<8x32xf32>
    %158 = math.exp %157 : vector<8x32xf32>
    %cst_51 = arith.constant 1.000000e+00 : f32
    %159 = vector.broadcast %cst_51 : f32 to vector<8x32xf32>
    %160 = arith.addf %159, %158 : vector<8x32xf32>
    %161 = arith.divf %159, %160 : vector<8x32xf32>
    %162 = arith.mulf %153, %125 : vector<8x32xf32>
    %163 = arith.mulf %147, %155 : vector<8x32xf32>
    %164 = arith.addf %162, %163 : vector<8x32xf32>
    %165 = math.tanh %164 : vector<8x32xf32>
    %166 = arith.mulf %161, %165 : vector<8x32xf32>
    %167 = arith.truncf %166 : vector<8x32xf32> to vector<8x32xbf16>
    %cst_52 = arith.constant dense<0.000000e+00> : vector<8x128xf32>
    %168 = tpu.matmul %167, %12, %cst_52 {dimension_numbers = #tpu.dot_dimension_numbers<[1], [0], [0], [1], [0, 0, 1, 1], [], []>} : vector<8x32xbf16>, vector<32x128xbf16>, vector<8x128xf32> -> vector<8x128xf32>
    %169 = arith.addf %168, %15 : vector<8x128xf32>
    %170 = arith.index_cast %c3_i32 : i32 to index
    %c0_53 = arith.constant 0 : index
    %c0_54 = arith.constant 0 : index
    %171 = vector.load %arg10[%170, %c0_53, %c0_54] : memref<8x8x128xf32, #tpu.memory_space<vmem>>, vector<1x8x128xf32>
    %172 = vector.shape_cast %171 : vector<1x8x128xf32> to vector<8x128xf32>
    %173 = vector.shape_cast %169 : vector<8x128xf32> to vector<1x8x128xf32>
    tpu.vector_store %arg10[%170, %c0_53, %c0_54], %173 {strides = array<i32>} : memref<8x8x128xf32, #tpu.memory_space<vmem>>, vector<1x8x128xf32>,
    %c4_i32 = arith.constant 4 : i32
    %c8_i32_55 = arith.constant 8 : i32
    %174 = arith.muli %c4_i32, %c8_i32_55 : i32
    %175 = tpu.assume_multiple %174, 8 : i32
    %176 = arith.index_cast %175 : i32 to index
    %c0_56 = arith.constant 0 : index
    %177 = vector.load %arg13[%176, %c0_56] : memref<64x128xf32, #tpu.memory_space<vmem>>, vector<8x128xf32>
    %178 = arith.truncf %166 : vector<8x32xf32> to vector<8x32xbf16>
    %cst_57 = arith.constant dense<0.000000e+00> : vector<8x128xf32>
    %179 = tpu.matmul %178, %11, %cst_57 {dimension_numbers = #tpu.dot_dimension_numbers<[1], [0], [0], [1], [0, 0, 1, 1], [], []>} : vector<8x32xbf16>, vector<32x128xbf16>, vector<8x128xf32> -> vector<8x128xf32>
    %180 = arith.addf %177, %179 : vector<8x128xf32>
    %181 = vector.extract_strided_slice %180 {offsets = [0, 0], sizes = [8, 32], strides = [1, 1]} : vector<8x128xf32> to vector<8x32xf32>
    %182 = arith.negf %181 : vector<8x32xf32>
    %183 = math.exp %182 : vector<8x32xf32>
    %cst_58 = arith.constant 1.000000e+00 : f32
    %184 = vector.broadcast %cst_58 : f32 to vector<8x32xf32>
    %185 = arith.addf %184, %183 : vector<8x32xf32>
    %186 = arith.divf %184, %185 : vector<8x32xf32>
    %187 = vector.extract_strided_slice %180 {offsets = [0, 32], sizes = [8, 32], strides = [1, 1]} : vector<8x128xf32> to vector<8x32xf32>
    %188 = arith.negf %187 : vector<8x32xf32>
    %189 = math.exp %188 : vector<8x32xf32>
    %cst_59 = arith.constant 1.000000e+00 : f32
    %190 = vector.broadcast %cst_59 : f32 to vector<8x32xf32>
    %191 = arith.addf %190, %189 : vector<8x32xf32>
    %192 = arith.divf %190, %191 : vector<8x32xf32>
    %193 = vector.extract_strided_slice %180 {offsets = [0, 64], sizes = [8, 32], strides = [1, 1]} : vector<8x128xf32> to vector<8x32xf32>
    %194 = math.tanh %193 : vector<8x32xf32>
    %195 = vector.extract_strided_slice %180 {offsets = [0, 96], sizes = [8, 32], strides = [1, 1]} : vector<8x128xf32> to vector<8x32xf32>
    %196 = arith.negf %195 : vector<8x32xf32>
    %197 = math.exp %196 : vector<8x32xf32>
    %cst_60 = arith.constant 1.000000e+00 : f32
    %198 = vector.broadcast %cst_60 : f32 to vector<8x32xf32>
    %199 = arith.addf %198, %197 : vector<8x32xf32>
    %200 = arith.divf %198, %199 : vector<8x32xf32>
    %201 = arith.mulf %192, %164 : vector<8x32xf32>
    %202 = arith.mulf %186, %194 : vector<8x32xf32>
    %203 = arith.addf %201, %202 : vector<8x32xf32>
    %204 = math.tanh %203 : vector<8x32xf32>
    %205 = arith.mulf %200, %204 : vector<8x32xf32>
    %206 = arith.truncf %205 : vector<8x32xf32> to vector<8x32xbf16>
    %cst_61 = arith.constant dense<0.000000e+00> : vector<8x128xf32>
    %207 = tpu.matmul %206, %12, %cst_61 {dimension_numbers = #tpu.dot_dimension_numbers<[1], [0], [0], [1], [0, 0, 1, 1], [], []>} : vector<8x32xbf16>, vector<32x128xbf16>, vector<8x128xf32> -> vector<8x128xf32>
    %208 = arith.addf %207, %15 : vector<8x128xf32>
    %209 = arith.index_cast %c4_i32 : i32 to index
    %c0_62 = arith.constant 0 : index
    %c0_63 = arith.constant 0 : index
    %210 = vector.load %arg10[%209, %c0_62, %c0_63] : memref<8x8x128xf32, #tpu.memory_space<vmem>>, vector<1x8x128xf32>
    %211 = vector.shape_cast %210 : vector<1x8x128xf32> to vector<8x128xf32>
    %212 = vector.shape_cast %208 : vector<8x128xf32> to vector<1x8x128xf32>
    tpu.vector_store %arg10[%209, %c0_62, %c0_63], %212 {strides = array<i32>} : memref<8x8x128xf32, #tpu.memory_space<vmem>>, vector<1x8x128xf32>,
    %c5_i32 = arith.constant 5 : i32
    %c8_i32_64 = arith.constant 8 : i32
    %213 = arith.muli %c5_i32, %c8_i32_64 : i32
    %214 = tpu.assume_multiple %213, 8 : i32
    %215 = arith.index_cast %214 : i32 to index
    %c0_65 = arith.constant 0 : index
    %216 = vector.load %arg13[%215, %c0_65] : memref<64x128xf32, #tpu.memory_space<vmem>>, vector<8x128xf32>
    %217 = arith.truncf %205 : vector<8x32xf32> to vector<8x32xbf16>
    %cst_66 = arith.constant dense<0.000000e+00> : vector<8x128xf32>
    %218 = tpu.matmul %217, %11, %cst_66 {dimension_numbers = #tpu.dot_dimension_numbers<[1], [0], [0], [1], [0, 0, 1, 1], [], []>} : vector<8x32xbf16>, vector<32x128xbf16>, vector<8x128xf32> -> vector<8x128xf32>
    %219 = arith.addf %216, %218 : vector<8x128xf32>
    %220 = vector.extract_strided_slice %219 {offsets = [0, 0], sizes = [8, 32], strides = [1, 1]} : vector<8x128xf32> to vector<8x32xf32>
    %221 = arith.negf %220 : vector<8x32xf32>
    %222 = math.exp %221 : vector<8x32xf32>
    %cst_67 = arith.constant 1.000000e+00 : f32
    %223 = vector.broadcast %cst_67 : f32 to vector<8x32xf32>
    %224 = arith.addf %223, %222 : vector<8x32xf32>
    %225 = arith.divf %223, %224 : vector<8x32xf32>
    %226 = vector.extract_strided_slice %219 {offsets = [0, 32], sizes = [8, 32], strides = [1, 1]} : vector<8x128xf32> to vector<8x32xf32>
    %227 = arith.negf %226 : vector<8x32xf32>
    %228 = math.exp %227 : vector<8x32xf32>
    %cst_68 = arith.constant 1.000000e+00 : f32
    %229 = vector.broadcast %cst_68 : f32 to vector<8x32xf32>
    %230 = arith.addf %229, %228 : vector<8x32xf32>
    %231 = arith.divf %229, %230 : vector<8x32xf32>
    %232 = vector.extract_strided_slice %219 {offsets = [0, 64], sizes = [8, 32], strides = [1, 1]} : vector<8x128xf32> to vector<8x32xf32>
    %233 = math.tanh %232 : vector<8x32xf32>
    %234 = vector.extract_strided_slice %219 {offsets = [0, 96], sizes = [8, 32], strides = [1, 1]} : vector<8x128xf32> to vector<8x32xf32>
    %235 = arith.negf %234 : vector<8x32xf32>
    %236 = math.exp %235 : vector<8x32xf32>
    %cst_69 = arith.constant 1.000000e+00 : f32
    %237 = vector.broadcast %cst_69 : f32 to vector<8x32xf32>
    %238 = arith.addf %237, %236 : vector<8x32xf32>
    %239 = arith.divf %237, %238 : vector<8x32xf32>
    %240 = arith.mulf %231, %203 : vector<8x32xf32>
    %241 = arith.mulf %225, %233 : vector<8x32xf32>
    %242 = arith.addf %240, %241 : vector<8x32xf32>
    %243 = math.tanh %242 : vector<8x32xf32>
    %244 = arith.mulf %239, %243 : vector<8x32xf32>
    %245 = arith.truncf %244 : vector<8x32xf32> to vector<8x32xbf16>
    %cst_70 = arith.constant dense<0.000000e+00> : vector<8x128xf32>
    %246 = tpu.matmul %245, %12, %cst_70 {dimension_numbers = #tpu.dot_dimension_numbers<[1], [0], [0], [1], [0, 0, 1, 1], [], []>} : vector<8x32xbf16>, vector<32x128xbf16>, vector<8x128xf32> -> vector<8x128xf32>
    %247 = arith.addf %246, %15 : vector<8x128xf32>
    %248 = arith.index_cast %c5_i32 : i32 to index
    %c0_71 = arith.constant 0 : index
    %c0_72 = arith.constant 0 : index
    %249 = vector.load %arg10[%248, %c0_71, %c0_72] : memref<8x8x128xf32, #tpu.memory_space<vmem>>, vector<1x8x128xf32>
    %250 = vector.shape_cast %249 : vector<1x8x128xf32> to vector<8x128xf32>
    %251 = vector.shape_cast %247 : vector<8x128xf32> to vector<1x8x128xf32>
    tpu.vector_store %arg10[%248, %c0_71, %c0_72], %251 {strides = array<i32>} : memref<8x8x128xf32, #tpu.memory_space<vmem>>, vector<1x8x128xf32>,
    %c6_i32 = arith.constant 6 : i32
    %c8_i32_73 = arith.constant 8 : i32
    %252 = arith.muli %c6_i32, %c8_i32_73 : i32
    %253 = tpu.assume_multiple %252, 8 : i32
    %254 = arith.index_cast %253 : i32 to index
    %c0_74 = arith.constant 0 : index
    %255 = vector.load %arg13[%254, %c0_74] : memref<64x128xf32, #tpu.memory_space<vmem>>, vector<8x128xf32>
    %256 = arith.truncf %244 : vector<8x32xf32> to vector<8x32xbf16>
    %cst_75 = arith.constant dense<0.000000e+00> : vector<8x128xf32>
    %257 = tpu.matmul %256, %11, %cst_75 {dimension_numbers = #tpu.dot_dimension_numbers<[1], [0], [0], [1], [0, 0, 1, 1], [], []>} : vector<8x32xbf16>, vector<32x128xbf16>, vector<8x128xf32> -> vector<8x128xf32>
    %258 = arith.addf %255, %257 : vector<8x128xf32>
    %259 = vector.extract_strided_slice %258 {offsets = [0, 0], sizes = [8, 32], strides = [1, 1]} : vector<8x128xf32> to vector<8x32xf32>
    %260 = arith.negf %259 : vector<8x32xf32>
    %261 = math.exp %260 : vector<8x32xf32>
    %cst_76 = arith.constant 1.000000e+00 : f32
    %262 = vector.broadcast %cst_76 : f32 to vector<8x32xf32>
    %263 = arith.addf %262, %261 : vector<8x32xf32>
    %264 = arith.divf %262, %263 : vector<8x32xf32>
    %265 = vector.extract_strided_slice %258 {offsets = [0, 32], sizes = [8, 32], strides = [1, 1]} : vector<8x128xf32> to vector<8x32xf32>
    %266 = arith.negf %265 : vector<8x32xf32>
    %267 = math.exp %266 : vector<8x32xf32>
    %cst_77 = arith.constant 1.000000e+00 : f32
    %268 = vector.broadcast %cst_77 : f32 to vector<8x32xf32>
    %269 = arith.addf %268, %267 : vector<8x32xf32>
    %270 = arith.divf %268, %269 : vector<8x32xf32>
    %271 = vector.extract_strided_slice %258 {offsets = [0, 64], sizes = [8, 32], strides = [1, 1]} : vector<8x128xf32> to vector<8x32xf32>
    %272 = math.tanh %271 : vector<8x32xf32>
    %273 = vector.extract_strided_slice %258 {offsets = [0, 96], sizes = [8, 32], strides = [1, 1]} : vector<8x128xf32> to vector<8x32xf32>
    %274 = arith.negf %273 : vector<8x32xf32>
    %275 = math.exp %274 : vector<8x32xf32>
    %cst_78 = arith.constant 1.000000e+00 : f32
    %276 = vector.broadcast %cst_78 : f32 to vector<8x32xf32>
    %277 = arith.addf %276, %275 : vector<8x32xf32>
    %278 = arith.divf %276, %277 : vector<8x32xf32>
    %279 = arith.mulf %270, %242 : vector<8x32xf32>
    %280 = arith.mulf %264, %272 : vector<8x32xf32>
    %281 = arith.addf %279, %280 : vector<8x32xf32>
    %282 = math.tanh %281 : vector<8x32xf32>
    %283 = arith.mulf %278, %282 : vector<8x32xf32>
    %284 = arith.truncf %283 : vector<8x32xf32> to vector<8x32xbf16>
    %cst_79 = arith.constant dense<0.000000e+00> : vector<8x128xf32>
    %285 = tpu.matmul %284, %12, %cst_79 {dimension_numbers = #tpu.dot_dimension_numbers<[1], [0], [0], [1], [0, 0, 1, 1], [], []>} : vector<8x32xbf16>, vector<32x128xbf16>, vector<8x128xf32> -> vector<8x128xf32>
    %286 = arith.addf %285, %15 : vector<8x128xf32>
    %287 = arith.index_cast %c6_i32 : i32 to index
    %c0_80 = arith.constant 0 : index
    %c0_81 = arith.constant 0 : index
    %288 = vector.load %arg10[%287, %c0_80, %c0_81] : memref<8x8x128xf32, #tpu.memory_space<vmem>>, vector<1x8x128xf32>
    %289 = vector.shape_cast %288 : vector<1x8x128xf32> to vector<8x128xf32>
    %290 = vector.shape_cast %286 : vector<8x128xf32> to vector<1x8x128xf32>
    tpu.vector_store %arg10[%287, %c0_80, %c0_81], %290 {strides = array<i32>} : memref<8x8x128xf32, #tpu.memory_space<vmem>>, vector<1x8x128xf32>,
    %c7_i32 = arith.constant 7 : i32
    %c8_i32_82 = arith.constant 8 : i32
    %291 = arith.muli %c7_i32, %c8_i32_82 : i32
    %292 = tpu.assume_multiple %291, 8 : i32
    %293 = arith.index_cast %292 : i32 to index
    %c0_83 = arith.constant 0 : index
    %294 = vector.load %arg13[%293, %c0_83] : memref<64x128xf32, #tpu.memory_space<vmem>>, vector<8x128xf32>
    %295 = arith.truncf %283 : vector<8x32xf32> to vector<8x32xbf16>
    %cst_84 = arith.constant dense<0.000000e+00> : vector<8x128xf32>
    %296 = tpu.matmul %295, %11, %cst_84 {dimension_numbers = #tpu.dot_dimension_numbers<[1], [0], [0], [1], [0, 0, 1, 1], [], []>} : vector<8x32xbf16>, vector<32x128xbf16>, vector<8x128xf32> -> vector<8x128xf32>
    %297 = arith.addf %294, %296 : vector<8x128xf32>
    %298 = vector.extract_strided_slice %297 {offsets = [0, 0], sizes = [8, 32], strides = [1, 1]} : vector<8x128xf32> to vector<8x32xf32>
    %299 = arith.negf %298 : vector<8x32xf32>
    %300 = math.exp %299 : vector<8x32xf32>
    %cst_85 = arith.constant 1.000000e+00 : f32
    %301 = vector.broadcast %cst_85 : f32 to vector<8x32xf32>
    %302 = arith.addf %301, %300 : vector<8x32xf32>
    %303 = arith.divf %301, %302 : vector<8x32xf32>
    %304 = vector.extract_strided_slice %297 {offsets = [0, 32], sizes = [8, 32], strides = [1, 1]} : vector<8x128xf32> to vector<8x32xf32>
    %305 = arith.negf %304 : vector<8x32xf32>
    %306 = math.exp %305 : vector<8x32xf32>
    %cst_86 = arith.constant 1.000000e+00 : f32
    %307 = vector.broadcast %cst_86 : f32 to vector<8x32xf32>
    %308 = arith.addf %307, %306 : vector<8x32xf32>
    %309 = arith.divf %307, %308 : vector<8x32xf32>
    %310 = vector.extract_strided_slice %297 {offsets = [0, 64], sizes = [8, 32], strides = [1, 1]} : vector<8x128xf32> to vector<8x32xf32>
    %311 = math.tanh %310 : vector<8x32xf32>
    %312 = vector.extract_strided_slice %297 {offsets = [0, 96], sizes = [8, 32], strides = [1, 1]} : vector<8x128xf32> to vector<8x32xf32>
    %313 = arith.negf %312 : vector<8x32xf32>
    %314 = math.exp %313 : vector<8x32xf32>
    %cst_87 = arith.constant 1.000000e+00 : f32
    %315 = vector.broadcast %cst_87 : f32 to vector<8x32xf32>
    %316 = arith.addf %315, %314 : vector<8x32xf32>
    %317 = arith.divf %315, %316 : vector<8x32xf32>
    %318 = arith.mulf %309, %281 : vector<8x32xf32>
    %319 = arith.mulf %303, %311 : vector<8x32xf32>
    %320 = arith.addf %318, %319 : vector<8x32xf32>
    %321 = math.tanh %320 : vector<8x32xf32>
    %322 = arith.mulf %317, %321 : vector<8x32xf32>
    %323 = arith.truncf %322 : vector<8x32xf32> to vector<8x32xbf16>
    %cst_88 = arith.constant dense<0.000000e+00> : vector<8x128xf32>
    %324 = tpu.matmul %323, %12, %cst_88 {dimension_numbers = #tpu.dot_dimension_numbers<[1], [0], [0], [1], [0, 0, 1, 1], [], []>} : vector<8x32xbf16>, vector<32x128xbf16>, vector<8x128xf32> -> vector<8x128xf32>
    %325 = arith.addf %324, %15 : vector<8x128xf32>
    %326 = arith.index_cast %c7_i32 : i32 to index
    %c0_89 = arith.constant 0 : index
    %c0_90 = arith.constant 0 : index
    %327 = vector.load %arg10[%326, %c0_89, %c0_90] : memref<8x8x128xf32, #tpu.memory_space<vmem>>, vector<1x8x128xf32>
    %328 = vector.shape_cast %327 : vector<1x8x128xf32> to vector<8x128xf32>
    %329 = vector.shape_cast %325 : vector<8x128xf32> to vector<1x8x128xf32>
    tpu.vector_store %arg10[%326, %c0_89, %c0_90], %329 {strides = array<i32>} : memref<8x8x128xf32, #tpu.memory_space<vmem>>, vector<1x8x128xf32>,
    %c8_i32_91 = arith.constant 8 : i32
    %c0_92 = arith.constant 0 : index
    %c0_93 = arith.constant 0 : index
    %330 = vector.load %arg14[%c0_92, %c0_93] : memref<8x32xf32, #tpu.memory_space<vmem>>, vector<8x32xf32>
    tpu.vector_store %arg14[%c0_92, %c0_93], %322 {strides = array<i32>} : memref<8x32xf32, #tpu.memory_space<vmem>>, vector<8x32xf32>,
    %c0_94 = arith.constant 0 : index
    %c0_95 = arith.constant 0 : index
    %331 = vector.load %arg15[%c0_94, %c0_95] : memref<8x32xf32, #tpu.memory_space<vmem>>, vector<8x32xf32>
    tpu.vector_store %arg15[%c0_94, %c0_95], %320 {strides = array<i32>} : memref<8x32xf32, #tpu.memory_space<vmem>>, vector<8x32xf32>,
    %c0_96 = arith.constant 0 : index
    %c0_97 = arith.constant 0 : index
    %332 = vector.load %arg11[%c0_96, %c0_97] : memref<8x32xf32, #tpu.memory_space<vmem>>, vector<8x32xf32>
    tpu.vector_store %arg11[%c0_96, %c0_97], %322 {strides = array<i32>} : memref<8x32xf32, #tpu.memory_space<vmem>>, vector<8x32xf32>,
    %c0_98 = arith.constant 0 : index
    %c0_99 = arith.constant 0 : index
    %333 = vector.load %arg12[%c0_98, %c0_99] : memref<8x32xf32, #tpu.memory_space<vmem>>, vector<8x32xf32>
    tpu.vector_store %arg12[%c0_98, %c0_99], %320 {strides = array<i32>} : memref<8x32xf32, #tpu.memory_space<vmem>>, vector<8x32xf32>,
    return
  }
  func.func @transform_0(%arg0: i32, %arg1: i32) -> (i32, i32, i32) {
    %c0_i32 = arith.constant 0 : i32
    %c0_i32_0 = arith.constant 0 : i32
    return %arg1, %arg0, %c0_i32 : i32, i32, i32
  }
  func.func @transform_1(%arg0: i32, %arg1: i32) -> (i32, i32) {
    %c0_i32 = arith.constant 0 : i32
    %c0_i32_0 = arith.constant 0 : i32
    return %arg0, %c0_i32 : i32, i32
  }
  func.func @transform_2(%arg0: i32, %arg1: i32) -> (i32, i32) {
    %c0_i32 = arith.constant 0 : i32
    %c0_i32_0 = arith.constant 0 : i32
    return %arg0, %c0_i32 : i32, i32
  }
  func.func @transform_3(%arg0: i32, %arg1: i32) -> (i32, i32) {
    %c0_i32 = arith.constant 0 : i32
    %c0_i32_0 = arith.constant 0 : i32
    %c0_i32_1 = arith.constant 0 : i32
    return %c0_i32, %c0_i32_0 : i32, i32
  }
  func.func @transform_4(%arg0: i32, %arg1: i32) -> (i32, i32) {
    %c0_i32 = arith.constant 0 : i32
    %c0_i32_0 = arith.constant 0 : i32
    %c0_i32_1 = arith.constant 0 : i32
    return %c0_i32, %c0_i32_0 : i32, i32
  }
  func.func @transform_5(%arg0: i32, %arg1: i32) -> (i32, i32) {
    %c0_i32 = arith.constant 0 : i32
    %c0_i32_0 = arith.constant 0 : i32
    %c0_i32_1 = arith.constant 0 : i32
    return %c0_i32, %c0_i32_0 : i32, i32
  }
  func.func @transform_6(%arg0: i32, %arg1: i32) -> (i32, i32) {
    %c0_i32 = arith.constant 0 : i32
    %c0_i32_0 = arith.constant 0 : i32
    %c0_i32_1 = arith.constant 0 : i32
    return %c0_i32, %c0_i32_0 : i32, i32
  }
  func.func @transform_7(%arg0: i32, %arg1: i32) -> (i32, i32) {
    %c0_i32 = arith.constant 0 : i32
    %c0_i32_0 = arith.constant 0 : i32
    %c0_i32_1 = arith.constant 0 : i32
    return %c0_i32, %c0_i32_0 : i32, i32
  }
  func.func @transform_8(%arg0: i32, %arg1: i32) -> (i32, i32, i32) {
    %c0_i32 = arith.constant 0 : i32
    %c0_i32_0 = arith.constant 0 : i32
    return %arg1, %arg0, %c0_i32 : i32, i32, i32
  }
  func.func @transform_9(%arg0: i32, %arg1: i32) -> (i32, i32) {
    %c0_i32 = arith.constant 0 : i32
    %c0_i32_0 = arith.constant 0 : i32
    return %arg0, %c0_i32 : i32, i32
  }
  func.func @transform_10(%arg0: i32, %arg1: i32) -> (i32, i32) {
    %c0_i32 = arith.constant 0 : i32
    %c0_i32_0 = arith.constant 0 : i32
    return %arg0, %c0_i32 : i32, i32
  }
}

</mosaic_0001>

<llo_original>
// kernel: tpu_custom_call.1
$region0: #{tpu_custom_call.1}
  #allocation0 [shape = 'u32[]', space=smem, size = 0x4, offset = 0x4, fixed_abs, tag = 'smem constant byte address 0x4 - core index']
  #allocation1 [shape = 'u32[72,128]{1,0:T(1,128)}', space=vmem, size = 0x9000, scoped, tag = 'internal scratch']
  #allocation2 [shape = 'f32[64,128]{1,0:T(8,128)}', space=vmem, size = 0x8000, scoped, tag = 'scratch operand']
  #allocation3 [shape = 'f32[8,32]{1,0:T(8,128)}', space=vmem, size = 0x1000, scoped, tag = 'scratch operand']
  #allocation4 [shape = 'f32[8,32]{1,0:T(8,128)}', space=vmem, size = 0x1000, scoped, tag = 'scratch operand']
  %s0 = inlined_call_operand.hbm [shape: bf16[8,8,32], index: 0, kind: input, shape index: {}]
  %s1 = inlined_call_operand.hbm [shape: f32[8,32], index: 1, kind: input, shape index: {}]
  %s2 = inlined_call_operand.hbm [shape: f32[8,32], index: 2, kind: input, shape index: {}]
  %s3 = inlined_call_operand.hbm [shape: bf16[32,128], index: 3, kind: input, shape index: {}]
  %s4 = inlined_call_operand.hbm [shape: bf16[32,128], index: 4, kind: input, shape index: {}]
  %s5 = inlined_call_operand.vmem [shape: f32[1,128], index: 5, kind: input, shape index: {}]
  %s6 = inlined_call_operand.hbm [shape: bf16[32,128], index: 6, kind: input, shape index: {}]
  %s7 = inlined_call_operand.vmem [shape: f32[1,128], index: 7, kind: input, shape index: {}]
  %s8 = inlined_call_operand.hbm [shape: f32[8,8,128], index: 8, kind: output, shape index: {0}]
  %s9 = inlined_call_operand.hbm [shape: f32[8,32], index: 9, kind: output, shape index: {1}]
  %s10 = inlined_call_operand.hbm [shape: f32[8,32], index: 10, kind: output, shape index: {2}]
  %11 = xla_tuple %s8, %s9, %s10
  %s12 = sld [smem:[#allocation0]]
  $region86: #{tpu_custom_call.1} parent=0
    _
  %s14 = ssub.s32 1, %s12
  %s15 = scalar_select 0, %s14, %s12
  $region1: #{tpu_custom_call.1} parent=0
    #allocation5 [shape = 'u8[16384]{0}', space=vmem, size = 0x4000, scoped, tag = 'input window, operand 0, single buffered']
    #allocation6 [shape = 's32[1]{0}', space=sflag, size = 0x4, scoped, tag = 'scoped memory for tpu_custom_call.1']
    #allocation7 [shape = 's32[1]{0}', space=sflag, size = 0x4, scoped, tag = 'scoped memory for tpu_custom_call.1']
    #allocation8 [shape = 'u8[4096]{0}', space=vmem, size = 0x1000, scoped, tag = 'input window, operand 1, single buffered']
    #allocation9 [shape = 's32[1]{0}', space=sflag, size = 0x4, scoped, tag = 'scoped memory for tpu_custom_call.1']
    #allocation10 [shape = 'u8[4096]{0}', space=vmem, size = 0x1000, scoped, tag = 'input window, operand 2, single buffered']
    #allocation11 [shape = 'u8[8192]{0}', space=vmem, size = 0x2000, scoped, tag = 'input window, operand 3, single buffered']
    #allocation12 [shape = 's32[1]{0}', space=sflag, size = 0x4, scoped, tag = 'scoped memory for tpu_custom_call.1']
    #allocation13 [shape = 'u8[8192]{0}', space=vmem, size = 0x2000, scoped, tag = 'input window, operand 4, single buffered']
    #allocation14 [shape = 'u8[8192]{0}', space=vmem, size = 0x2000, scoped, tag = 'input window, operand 6, single buffered']
    #allocation15 [shape = 's32[1]{0}', space=sflag, size = 0x4, scoped, tag = 'scoped memory for tpu_custom_call.1']
    #allocation16 [shape = 'u8[32768]{0}', space=vmem, size = 0x8000, scoped, tag = 'output window, operand 0, single buffered']
    #allocation17 [shape = 'u8[4096]{0}', space=vmem, size = 0x1000, scoped, tag = 'output window, operand 1, single buffered']
    #allocation18 [shape = 's32[1]{0}', space=sflag, size = 0x4, scoped, tag = 'scoped memory for tpu_custom_call.1']
    #allocation19 [shape = 'u8[4096]{0}', space=vmem, size = 0x1000, scoped, tag = 'output window, operand 2, single buffered']
    %16 = vsyncpa [#allocation6], 0
    %17 = vsyncpa [#allocation9], 0
    %18 = vsyncpa [#allocation12], 0
    %19 = vsyncpa [#allocation15], 0
    %20 = vsyncpa [#allocation7], 0
    %21 = vsyncpa [#allocation18], 0
    // Predicated region
    $region2: #{tpu_custom_call.1} parent=1 // pred_check
      _
    $region3: #{tpu_custom_call.1} parent=1 // pred_check_branch
      %23 = sbr.rel (0) target = $region5
    $region4: #{tpu_custom_call.1} parent=1 // pred_region
      %25 = vsyncadd [#allocation6], 0
      %s26 = sshll.u32 %s0, 4
      %s27 = int_to_ptr.hbm [resolvable:$true] %s26
      %s28 = sshll.u32 [#allocation5], 4
      %s29 = int_to_ptr.vmem [resolvable:$true] %s28
      %34 = dma.hbm_to_vmem [thread:$0]  %s27, 512, %s29, [#allocation6], 64, 64, 4
    $region5: #{tpu_custom_call.1} parent=1 // pred_fallthru
      _
    // Predicated region
    $region6: #{tpu_custom_call.1} parent=1 // pred_check
      _
    $region7: #{tpu_custom_call.1} parent=1 // pred_check_branch
      %36 = sbr.rel (0) target = $region9
    $region8: #{tpu_custom_call.1} parent=1 // pred_region
      %38 = vsyncadd [#allocation9], 0
      %s40 = sshll.u32 %s1, 4
      %s41 = int_to_ptr.hbm [resolvable:$true] %s40
      %s42 = sshll.u32 [#allocation8], 4
      %s43 = int_to_ptr.vmem [resolvable:$true] %s42
      %45 = dma.hbm_to_vmem [thread:$0]  %s41, 128, %s43, [#allocation9]
    $region9: #{tpu_custom_call.1} parent=1 // pred_fallthru
      _
    // Predicated region
    $region10: #{tpu_custom_call.1} parent=1 // pred_check
      _
    $region11: #{tpu_custom_call.1} parent=1 // pred_check_branch
      %47 = sbr.rel (0) target = $region13
    $region12: #{tpu_custom_call.1} parent=1 // pred_region
      %49 = vsyncadd [#allocation9], 0
      %s51 = sshll.u32 %s2, 4
      %s52 = int_to_ptr.hbm [resolvable:$true] %s51
      %s53 = sshll.u32 [#allocation10], 4
      %s54 = int_to_ptr.vmem [resolvable:$true] %s53
      %56 = dma.hbm_to_vmem [thread:$0]  %s52, 128, %s54, [#allocation9]
    $region13: #{tpu_custom_call.1} parent=1 // pred_fallthru
      _
    // Predicated region
    $region14: #{tpu_custom_call.1} parent=1 // pred_check
      _
    $region15: #{tpu_custom_call.1} parent=1 // pred_check_branch
      %58 = sbr.rel (0) target = $region17
    $region16: #{tpu_custom_call.1} parent=1 // pred_region
      %60 = vsyncadd [#allocation12], 0
      %s61 = sshll.u32 %s3, 4
      %s62 = int_to_ptr.hbm [resolvable:$true] %s61
      %s63 = sshll.u32 [#allocation11], 4
      %s64 = int_to_ptr.vmem [resolvable:$true] %s63
      %69 = dma.hbm_to_vmem [thread:$0]  %s62, 256, %s64, [#allocation12], 64, 64, 4
    $region17: #{tpu_custom_call.1} parent=1 // pred_fallthru
      _
    // Predicated region
    $region18: #{tpu_custom_call.1} parent=1 // pred_check
      _
    $region19: #{tpu_custom_call.1} parent=1 // pred_check_branch
      %71 = sbr.rel (0) target = $region21
    $region20: #{tpu_custom_call.1} parent=1 // pred_region
      %73 = vsyncadd [#allocation12], 0
      %s74 = sshll.u32 %s4, 4
      %s75 = int_to_ptr.hbm [resolvable:$true] %s74
      %s76 = sshll.u32 [#allocation13], 4
      %s77 = int_to_ptr.vmem [resolvable:$true] %s76
      %82 = dma.hbm_to_vmem [thread:$0]  %s75, 256, %s77, [#allocation12], 64, 64, 4
    $region21: #{tpu_custom_call.1} parent=1 // pred_fallthru
      _
    // Predicated region
    $region22: #{tpu_custom_call.1} parent=1 // pred_check
      _
    $region23: #{tpu_custom_call.1} parent=1 // pred_check_branch
      %84 = sbr.rel (0) target = $region25
    $region24: #{tpu_custom_call.1} parent=1 // pred_region
      _
    $region25: #{tpu_custom_call.1} parent=1 // pred_fallthru
      _
    // Predicated region
    $region26: #{tpu_custom_call.1} parent=1 // pred_check
      _
    $region27: #{tpu_custom_call.1} parent=1 // pred_check_branch
      %86 = sbr.rel (0) target = $region29
    $region28: #{tpu_custom_call.1} parent=1 // pred_region
      %88 = vsyncadd [#allocation15], 0
      %s89 = sshll.u32 %s6, 4
      %s90 = int_to_ptr.hbm [resolvable:$true] %s89
      %s91 = sshll.u32 [#allocation14], 4
      %s92 = int_to_ptr.vmem [resolvable:$true] %s91
      %97 = dma.hbm_to_vmem [thread:$0]  %s90, 256, %s92, [#allocation15], 64, 64, 4
    $region29: #{tpu_custom_call.1} parent=1 // pred_fallthru
      _
    // Predicated region
    $region30: #{tpu_custom_call.1} parent=1 // pred_check
      _
    $region31: #{tpu_custom_call.1} parent=1 // pred_check_branch
      %99 = sbr.rel (0) target = $region33
    $region32: #{tpu_custom_call.1} parent=1 // pred_region
      _
    $region33: #{tpu_custom_call.1} parent=1 // pred_fallthru
      _
    // Predicated region
    $region34: #{tpu_custom_call.1} parent=1 // pred_check
      _
    $region35: #{tpu_custom_call.1} parent=1 // pred_check_branch
      %101 = sbr.rel (0) target = $region37
    $region36: #{tpu_custom_call.1} parent=1 // pred_region
      %103 = dma.done [#allocation6], 512
    $region37: #{tpu_custom_call.1} parent=1 // pred_fallthru
      _
    // Predicated region
    $region38: #{tpu_custom_call.1} parent=1 // pred_check
      _
    $region39: #{tpu_custom_call.1} parent=1 // pred_check_branch
      %105 = sbr.rel (0) target = $region41
    $region40: #{tpu_custom_call.1} parent=1 // pred_region
      %107 = dma.done [#allocation9], 128
    $region41: #{tpu_custom_call.1} parent=1 // pred_fallthru
      _
    // Predicated region
    $region42: #{tpu_custom_call.1} parent=1 // pred_check
      _
    $region43: #{tpu_custom_call.1} parent=1 // pred_check_branch
      %109 = sbr.rel (0) target = $region45
    $region44: #{tpu_custom_call.1} parent=1 // pred_region
      %111 = dma.done [#allocation9], 128
    $region45: #{tpu_custom_call.1} parent=1 // pred_fallthru
      _
    // Predicated region
    $region46: #{tpu_custom_call.1} parent=1 // pred_check
      _
    $region47: #{tpu_custom_call.1} parent=1 // pred_check_branch
      %113 = sbr.rel (0) target = $region49
    $region48: #{tpu_custom_call.1} parent=1 // pred_region
      %115 = dma.done [#allocation12], 256
    $region49: #{tpu_custom_call.1} parent=1 // pred_fallthru
      _
    // Predicated region
    $region50: #{tpu_custom_call.1} parent=1 // pred_check
      _
    $region51: #{tpu_custom_call.1} parent=1 // pred_check_branch
      %117 = sbr.rel (0) target = $region53
    $region52: #{tpu_custom_call.1} parent=1 // pred_region
      %119 = dma.done [#allocation12], 256
    $region53: #{tpu_custom_call.1} parent=1 // pred_fallthru
      _
    // Predicated region
    $region54: #{tpu_custom_call.1} parent=1 // pred_check
      _
    $region55: #{tpu_custom_call.1} parent=1 // pred_check_branch
      %121 = sbr.rel (0) target = $region57
    $region56: #{tpu_custom_call.1} parent=1 // pred_region
      %123 = dma.done [#allocation15], 256
    $region57: #{tpu_custom_call.1} parent=1 // pred_fallthru
      _
    %p125 = scmp.eq.s32.totalorder 0, 0
    // Predicated region
    $region58: #{tpu_custom_call.1} parent=1 // pred_check
      %p126 = pneg %p125
    $region59: #{tpu_custom_call.1} parent=1 // pred_check_branch
      %128 = sbr.rel (%p126) target = $region61
    $region60: #{tpu_custom_call.1} parent=1 // pred_region
      %v129 = vld [vmem:[#allocation8] sm:$0xff]
      %vm130 = vcmask 261120
      %131 = vst.msk [vmem:[#allocation3] sm:$0xff] %vm130, %v129
      %v132 = vld [vmem:[#allocation10] sm:$0xff]
      %133 = vst.msk [vmem:[#allocation4] sm:$0xff] %vm130, %v132
    $region61: #{tpu_custom_call.1} parent=1 // pred_fallthru
      _
    %v134 = vld [vmem:[#allocation5] sm:$0xf]
    %v135 = vld [vmem:[#allocation5 + $0x4] sm:$0xf]
    %v136 = vld [vmem:[#allocation5 + $0x8] sm:$0xf]
    %v137 = vld [vmem:[#allocation5 + $0xc] sm:$0xf]
    %v138 = vld [vmem:[#allocation5 + $0x10] sm:$0xf]
    %v139 = vld [vmem:[#allocation5 + $0x14] sm:$0xf]
    %v140 = vld [vmem:[#allocation5 + $0x18] sm:$0xf]
    %v141 = vld [vmem:[#allocation5 + $0x1c] sm:$0xf]
    %v142 = vld [vmem:[#allocation11] sm:$0xf]
    %v143 = vld [vmem:[#allocation11 + $0x4] sm:$0xf]
    %v144 = vld [vmem:[#allocation11 + $0x8] sm:$0xf]
    %v145 = vld [vmem:[#allocation11 + $0xc] sm:$0xf]
    %v146 = vld [vmem:[%s5] sm:$0x1]
    %v148 = vperm.slane %v146, 0
    %v158 = vunpack.c.l.b16 %v134
    %v159 = vunpack.c.l.b16 %v135
    %v160 = vunpack.c.l.b16 %v136
    %v161 = vunpack.c.l.b16 %v137
    %v162 = vunpack.c.l.b16 %v138
    %v163 = vunpack.c.l.b16 %v139
    %v164 = vunpack.c.l.b16 %v140
    %v165 = vunpack.c.l.b16 %v141
    %v166 = vpack.c.b16 %v159, %v158
    %v167 = vpack.c.b16 %v161, %v160
    %v168 = vpack.c.b16 %v163, %v162
    %v169 = vpack.c.b16 %v165, %v164
    %v174 = vunpack.c.l.b16 %v142
    %v175 = vunpack.c.l.b16 %v143
    %v176 = vunpack.c.l.b16 %v144
    %v177 = vunpack.c.l.b16 %v145
    %v178 = vpack.c.b16 %v175, %v174
    %v179 = vpack.c.b16 %v177, %v176
    %vm182 = vcmask 261120
    %v184 = vsel %vm182, %v166, 0
    %v187 = vsel %vm182, %v167, 0
    %v190 = vsel %vm182, %v168, 0
    %v193 = vsel %vm182, %v169, 0
    %195 = vmatpush.bf16.msra.mxu0 0
    %196 = vmatpush.bf16.msra.mxu0 0
    %197 = vmatpush.bf16.msra.mxu0 0
    %198 = vmatpush.bf16.msra.mxu0 0
    %199 = vmatpush.bf16.msra.mxu0 0
    %200 = vmatpush.bf16.msra.mxu0 0
    %201 = vmatpush.bf16.msra.mxu0 %v179
    %202 = vmatpush.bf16.msra.mxu0 %v178
    %203 = vmatmul.bf16.gmra.mxu0 %v184
    %v204 = vpop.f32.mrf.mxu0
    %v205 = vadd.f32 %v148, %v204
    %v206 = vpop.f32.mrf.mxu0
    %v207 = vadd.f32 %v148, %v206
    %208 = vmatmul.bf16.gmra.mxu0 %v187
    %v209 = vpop.f32.mrf.mxu0
    %v210 = vadd.f32 %v148, %v209
    %v211 = vpop.f32.mrf.mxu0
    %v212 = vadd.f32 %v148, %v211
    %213 = vmatmul.bf16.gmra.mxu0 %v190
    %v214 = vpop.f32.mrf.mxu0
    %v215 = vadd.f32 %v148, %v214
    %v216 = vpop.f32.mrf.mxu0
    %v217 = vadd.f32 %v148, %v216
    %218 = vmatmul.bf16.gmra.mxu0 %v193
    %v219 = vpop.f32.mrf.mxu0
    %v220 = vadd.f32 %v148, %v219
    %v221 = vpop.f32.mrf.mxu0
    %v222 = vadd.f32 %v148, %v221
    %223 = vdwg.mxu0
    %224 = vst [vmem:[#allocation2] sm:$0xff] %v205
    %225 = vst [vmem:[#allocation2 + $0x8] sm:$0xff] %v207
    %226 = vst [vmem:[#allocation2 + $0x10] sm:$0xff] %v210
    %227 = vst [vmem:[#allocation2 + $0x18] sm:$0xff] %v212
    %228 = vst [vmem:[#allocation2 + $0x20] sm:$0xff] %v215
    %229 = vst [vmem:[#allocation2 + $0x28] sm:$0xff] %v217
    %230 = vst [vmem:[#allocation2 + $0x30] sm:$0xff] %v220
    %231 = vst [vmem:[#allocation2 + $0x38] sm:$0xff] %v222
    %v232 = vld [vmem:[#allocation13] sm:$0xf]
    %v233 = vld [vmem:[#allocation13 + $0x4] sm:$0xf]
    %v234 = vld [vmem:[#allocation13 + $0x8] sm:$0xf]
    %v235 = vld [vmem:[#allocation13 + $0xc] sm:$0xf]
    %v236 = vld [vmem:[#allocation14] sm:$0xf]
    %v237 = vld [vmem:[#allocation14 + $0x4] sm:$0xf]
    %v238 = vld [vmem:[#allocation14 + $0x8] sm:$0xf]
    %v239 = vld [vmem:[#allocation14 + $0xc] sm:$0xf]
    %v240 = vld [vmem:[%s7] sm:$0x1]
    %v242 = vperm.slane %v240, 0
    %v244 = vld [vmem:[#allocation3] sm:$0xff]
    %v245 = vld [vmem:[#allocation4] sm:$0xff]
    %v246 = vld [vmem:[#allocation2] sm:$0xff]
    %v247 = vpack.c.bf16 %v244, %v244
    %v252 = vunpack.c.l.b16 %v232
    %v253 = vunpack.c.l.b16 %v233
    %v254 = vunpack.c.l.b16 %v234
    %v255 = vunpack.c.l.b16 %v235
    %v256 = vpack.c.b16 %v253, %v252
    %v257 = vpack.c.b16 %v255, %v254
    %v261 = vsel %vm182, %v247, 0
    %263 = vmatpush.bf16.msra.mxu0 0
    %264 = vmatpush.bf16.msra.mxu0 0
    %265 = vmatpush.bf16.msra.mxu0 0
    %266 = vmatpush.bf16.msra.mxu0 0
    %267 = vmatpush.bf16.msra.mxu0 0
    %268 = vmatpush.bf16.msra.mxu0 0
    %269 = vmatpush.bf16.msra.mxu0 %v257
    %270 = vmatpush.bf16.msra.mxu0 %v256
    %271 = vmatmul.bf16.gmra.mxu0 %v261
    %v272 = vpop.f32.mrf.mxu0
    %v273 = vadd.f32 0.0, %v272
    %v274 = vpop.f32.mrf.mxu0
    %275 = vdwg.mxu0
    %v276 = vadd.f32 %v246, %v273
    %v277 = vxor.u32 %v276, 2147483648
    %v278 = vmul.f32 %v277, 1.442695
    %v279 = vpow.pop %v278
    %v280 = vadd.f32 %v279, 1.0
    %v281 = vrcp.pop %v280
    %v282 = vmul.f32 %v280, %v281
    %v283 = vsub.f32 1.0, %v282
    %v284 = vmul.f32 %v281, %v283
    %v285 = vadd.f32 %v281, %v284
    %vm286 = vweird.f32 %v280
    %vm287 = vweird.f32 %v281
    %vm288 = vmor %vm286, %vm287
    %v289 = vsel %vm288, %v281, %v285
    %v290 = vand.u32 2147483647, %v280
    %vm291 = vcmp.eq.f32.partialorder %v290, 8.507059e+37
    %v292 = vand.u32 %v280, 2147483648
    %v293 = vor.u32 1.1754944e-38, %v292
    %v294 = vsel %vm291, %v293, %v289
    %v295 = vmul.f32 1.0, %v294
    %v296 = vtanh.pop %v276
    %298 = vrot.lane.b32.xlu0 %v245, 32
    %v299 = vpop.permute.xlu0 %298
    %v301 = vmul.f32 %v295, %v299
    %303 = vrot.lane.b32.xlu0 %v296, 64
    %v304 = vpop.permute.xlu0 %303
    %v306 = vmul.f32 %v295, %v304
    %308 = vrot.lane.b32.xlu0 %v306, 32
    %v309 = vpop.permute.xlu0 %308
    %v311 = vadd.f32 %v301, %v309
    %v312 = vtanh.pop %v311
    %314 = vrot.lane.b32.xlu0 %v312, 64
    %v315 = vpop.permute.xlu0 %314
    %v317 = vmul.f32 %v295, %v315
    %v318 = vpack.c.bf16 %v317, %v317
    %320 = vrot.lane.b32.xlu0 %v318, 32
    %v321 = vpop.permute.xlu0 %320
    %v326 = vunpack.c.l.b16 %v236
    %v327 = vunpack.c.l.b16 %v237
    %v328 = vunpack.c.l.b16 %v238
    %v329 = vunpack.c.l.b16 %v239
    %v330 = vpack.c.b16 %v327, %v326
    %v331 = vpack.c.b16 %v329, %v328
    %v335 = vsel %vm182, %v321, 0
    %337 = vmatpush.bf16.msra.mxu0 0
    %338 = vmatpush.bf16.msra.mxu0 0
    %339 = vmatpush.bf16.msra.mxu0 0
    %340 = vmatpush.bf16.msra.mxu0 0
    %341 = vmatpush.bf16.msra.mxu0 0
    %342 = vmatpush.bf16.msra.mxu0 0
    %343 = vmatpush.bf16.msra.mxu0 %v331
    %344 = vmatpush.bf16.msra.mxu0 %v330
    %345 = vmatmul.bf16.gmra.mxu0 %v335
    %v346 = vpop.f32.mrf.mxu0
    %v347 = vadd.f32 %v242, %v346
    %v348 = vpop.f32.mrf.mxu0
    %349 = vdwg.mxu0
    %350 = vst [vmem:[#allocation16] sm:$0xff] %v347
    %s351 = scalar_lea.vmem [#allocation2], 8
    %v352 = vld [vmem:[%s351] sm:$0xff]
    %353 = vmatpush.bf16.msra.mxu0 0
    %354 = vmatpush.bf16.msra.mxu0 0
    %355 = vmatpush.bf16.msra.mxu0 0
    %356 = vmatpush.bf16.msra.mxu0 0
    %357 = vmatpush.bf16.msra.mxu0 0
    %358 = vmatpush.bf16.msra.mxu0 0
    %359 = vmatpush.bf16.msra.mxu0 %v257
    %360 = vmatpush.bf16.msra.mxu0 %v256
    %361 = vmatmul.bf16.gmra.mxu0 %v335
    %v362 = vpop.f32.mrf.mxu0
    %v363 = vadd.f32 0.0, %v362
    %v364 = vpop.f32.mrf.mxu0
    %365 = vdwg.mxu0
    %v366 = vadd.f32 %v352, %v363
    %v367 = vxor.u32 %v366, 2147483648
    %v368 = vmul.f32 %v367, 1.442695
    %v369 = vpow.pop %v368
    %v370 = vadd.f32 %v369, 1.0
    %v371 = vrcp.pop %v370
    %v372 = vmul.f32 %v370, %v371
    %v373 = vsub.f32 1.0, %v372
    %v374 = vmul.f32 %v371, %v373
    %v375 = vadd.f32 %v371, %v374
    %vm376 = vweird.f32 %v370
    %vm377 = vweird.f32 %v371
    %vm378 = vmor %vm376, %vm377
    %v379 = vsel %vm378, %v371, %v375
    %v380 = vand.u32 2147483647, %v370
    %vm381 = vcmp.eq.f32.partialorder %v380, 8.507059e+37
    %v382 = vand.u32 %v370, 2147483648
    %v383 = vor.u32 1.1754944e-38, %v382
    %v384 = vsel %vm381, %v383, %v379
    %v385 = vmul.f32 1.0, %v384
    %v386 = vtanh.pop %v366
    %v387 = vmul.f32 %v385, %v311
    %389 = vrot.lane.b32.xlu0 %v386, 64
    %v390 = vpop.permute.xlu0 %389
    %v392 = vmul.f32 %v385, %v390
    %394 = vrot.lane.b32.xlu0 %v392, 32
    %v395 = vpop.permute.xlu0 %394
    %v397 = vadd.f32 %v387, %v395
    %v398 = vtanh.pop %v397
    %400 = vrot.lane.b32.xlu0 %v398, 64
    %v401 = vpop.permute.xlu0 %400
    %v403 = vmul.f32 %v385, %v401
    %v404 = vpack.c.bf16 %v403, %v403
    %406 = vrot.lane.b32.xlu0 %v404, 32
    %v407 = vpop.permute.xlu0 %406
    %v409 = vsel %vm182, %v407, 0
    %411 = vmatpush.bf16.msra.mxu0 0
    %412 = vmatpush.bf16.msra.mxu0 0
    %413 = vmatpush.bf16.msra.mxu0 0
    %414 = vmatpush.bf16.msra.mxu0 0
    %415 = vmatpush.bf16.msra.mxu0 0
    %416 = vmatpush.bf16.msra.mxu0 0
    %417 = vmatpush.bf16.msra.mxu0 %v331
    %418 = vmatpush.bf16.msra.mxu0 %v330
    %419 = vmatmul.bf16.gmra.mxu0 %v409
    %v420 = vpop.f32.mrf.mxu0
    %v421 = vadd.f32 %v242, %v420
    %v422 = vpop.f32.mrf.mxu0
    %423 = vdwg.mxu0
    %s424 = scalar_lea.vmem [#allocation16], 8
    %425 = vst [vmem:[%s424] sm:$0xff] %v421
    %s426 = scalar_lea.vmem [#allocation2], 16
    %v427 = vld [vmem:[%s426] sm:$0xff]
    %428 = vmatpush.bf16.msra.mxu0 0
    %429 = vmatpush.bf16.msra.mxu0 0
    %430 = vmatpush.bf16.msra.mxu0 0
    %431 = vmatpush.bf16.msra.mxu0 0
    %432 = vmatpush.bf16.msra.mxu0 0
    %433 = vmatpush.bf16.msra.mxu0 0
    %434 = vmatpush.bf16.msra.mxu0 %v257
    %435 = vmatpush.bf16.msra.mxu0 %v256
    %436 = vmatmul.bf16.gmra.mxu0 %v409
    %v437 = vpop.f32.mrf.mxu0
    %v438 = vadd.f32 0.0, %v437
    %v439 = vpop.f32.mrf.mxu0
    %440 = vdwg.mxu0
    %v441 = vadd.f32 %v427, %v438
    %v442 = vxor.u32 %v441, 2147483648
    %v443 = vmul.f32 %v442, 1.442695
    %v444 = vpow.pop %v443
    %v445 = vadd.f32 %v444, 1.0
    %v446 = vrcp.pop %v445
    %v447 = vmul.f32 %v445, %v446
    %v448 = vsub.f32 1.0, %v447
    %v449 = vmul.f32 %v446, %v448
    %v450 = vadd.f32 %v446, %v449
    %vm451 = vweird.f32 %v445
    %vm452 = vweird.f32 %v446
    %vm453 = vmor %vm451, %vm452
    %v454 = vsel %vm453, %v446, %v450
    %v455 = vand.u32 2147483647, %v445
    %vm456 = vcmp.eq.f32.partialorder %v455, 8.507059e+37
    %v457 = vand.u32 %v445, 2147483648
    %v458 = vor.u32 1.1754944e-38, %v457
    %v459 = vsel %vm456, %v458, %v454
    %v460 = vmul.f32 1.0, %v459
    %v461 = vtanh.pop %v441
    %v462 = vmul.f32 %v460, %v397
    %464 = vrot.lane.b32.xlu0 %v461, 64
    %v465 = vpop.permute.xlu0 %464
    %v467 = vmul.f32 %v460, %v465
    %469 = vrot.lane.b32.xlu0 %v467, 32
    %v470 = vpop.permute.xlu0 %469
    %v472 = vadd.f32 %v462, %v470
    %v473 = vtanh.pop %v472
    %475 = vrot.lane.b32.xlu0 %v473, 64
    %v476 = vpop.permute.xlu0 %475
    %v478 = vmul.f32 %v460, %v476
    %v479 = vpack.c.bf16 %v478, %v478
    %481 = vrot.lane.b32.xlu0 %v479, 32
    %v482 = vpop.permute.xlu0 %481
    %v484 = vsel %vm182, %v482, 0
    %486 = vmatpush.bf16.msra.mxu0 0
    %487 = vmatpush.bf16.msra.mxu0 0
    %488 = vmatpush.bf16.msra.mxu0 0
    %489 = vmatpush.bf16.msra.mxu0 0
    %490 = vmatpush.bf16.msra.mxu0 0
    %491 = vmatpush.bf16.msra.mxu0 0
    %492 = vmatpush.bf16.msra.mxu0 %v331
    %493 = vmatpush.bf16.msra.mxu0 %v330
    %494 = vmatmul.bf16.gmra.mxu0 %v484
    %v495 = vpop.f32.mrf.mxu0
    %v496 = vadd.f32 %v242, %v495
    %v497 = vpop.f32.mrf.mxu0
    %498 = vdwg.mxu0
    %s499 = scalar_lea.vmem [#allocation16], 16
    %500 = vst [vmem:[%s499] sm:$0xff] %v496
    %s501 = scalar_lea.vmem [#allocation2], 24
    %v502 = vld [vmem:[%s501] sm:$0xff]
    %503 = vmatpush.bf16.msra.mxu0 0
    %504 = vmatpush.bf16.msra.mxu0 0
    %505 = vmatpush.bf16.msra.mxu0 0
    %506 = vmatpush.bf16.msra.mxu0 0
    %507 = vmatpush.bf16.msra.mxu0 0
    %508 = vmatpush.bf16.msra.mxu0 0
    %509 = vmatpush.bf16.msra.mxu0 %v257
    %510 = vmatpush.bf16.msra.mxu0 %v256
    %511 = vmatmul.bf16.gmra.mxu0 %v484
    %v512 = vpop.f32.mrf.mxu0
    %v513 = vadd.f32 0.0, %v512
    %v514 = vpop.f32.mrf.mxu0
    %515 = vdwg.mxu0
    %v516 = vadd.f32 %v502, %v513
    %v517 = vxor.u32 %v516, 2147483648
    %v518 = vmul.f32 %v517, 1.442695
    %v519 = vpow.pop %v518
    %v520 = vadd.f32 %v519, 1.0
    %v521 = vrcp.pop %v520
    %v522 = vmul.f32 %v520, %v521
    %v523 = vsub.f32 1.0, %v522
    %v524 = vmul.f32 %v521, %v523
    %v525 = vadd.f32 %v521, %v524
    %vm526 = vweird.f32 %v520
    %vm527 = vweird.f32 %v521
    %vm528 = vmor %vm526, %vm527
    %v529 = vsel %vm528, %v521, %v525
    %v530 = vand.u32 2147483647, %v520
    %vm531 = vcmp.eq.f32.partialorder %v530, 8.507059e+37
    %v532 = vand.u32 %v520, 2147483648
    %v533 = vor.u32 1.1754944e-38, %v532
    %v534 = vsel %vm531, %v533, %v529
    %v535 = vmul.f32 1.0, %v534
    %v536 = vtanh.pop %v516
    %v537 = vmul.f32 %v535, %v472
    %539 = vrot.lane.b32.xlu0 %v536, 64
    %v540 = vpop.permute.xlu0 %539
    %v542 = vmul.f32 %v535, %v540
    %544 = vrot.lane.b32.xlu0 %v542, 32
    %v545 = vpop.permute.xlu0 %544
    %v547 = vadd.f32 %v537, %v545
    %v548 = vtanh.pop %v547
    %550 = vrot.lane.b32.xlu0 %v548, 64
    %v551 = vpop.permute.xlu0 %550
    %v553 = vmul.f32 %v535, %v551
    %v554 = vpack.c.bf16 %v553, %v553
    %556 = vrot.lane.b32.xlu0 %v554, 32
    %v557 = vpop.permute.xlu0 %556
    %v559 = vsel %vm182, %v557, 0
    %561 = vmatpush.bf16.msra.mxu0 0
    %562 = vmatpush.bf16.msra.mxu0 0
    %563 = vmatpush.bf16.msra.mxu0 0
    %564 = vmatpush.bf16.msra.mxu0 0
    %565 = vmatpush.bf16.msra.mxu0 0
    %566 = vmatpush.bf16.msra.mxu0 0
    %567 = vmatpush.bf16.msra.mxu0 %v331
    %568 = vmatpush.bf16.msra.mxu0 %v330
    %569 = vmatmul.bf16.gmra.mxu0 %v559
    %v570 = vpop.f32.mrf.mxu0
    %v571 = vadd.f32 %v242, %v570
    %v572 = vpop.f32.mrf.mxu0
    %573 = vdwg.mxu0
    %s574 = scalar_lea.vmem [#allocation16], 24
    %575 = vst [vmem:[%s574] sm:$0xff] %v571
    %s576 = scalar_lea.vmem [#allocation2], 32
    %v577 = vld [vmem:[%s576] sm:$0xff]
    %578 = vmatpush.bf16.msra.mxu0 0
    %579 = vmatpush.bf16.msra.mxu0 0
    %580 = vmatpush.bf16.msra.mxu0 0
    %581 = vmatpush.bf16.msra.mxu0 0
    %582 = vmatpush.bf16.msra.mxu0 0
    %583 = vmatpush.bf16.msra.mxu0 0
    %584 = vmatpush.bf16.msra.mxu0 %v257
    %585 = vmatpush.bf16.msra.mxu0 %v256
    %586 = vmatmul.bf16.gmra.mxu0 %v559
    %v587 = vpop.f32.mrf.mxu0
    %v588 = vadd.f32 0.0, %v587
    %v589 = vpop.f32.mrf.mxu0
    %590 = vdwg.mxu0
    %v591 = vadd.f32 %v577, %v588
    %v592 = vxor.u32 %v591, 2147483648
    %v593 = vmul.f32 %v592, 1.442695
    %v594 = vpow.pop %v593
    %v595 = vadd.f32 %v594, 1.0
    %v596 = vrcp.pop %v595
    %v597 = vmul.f32 %v595, %v596
    %v598 = vsub.f32 1.0, %v597
    %v599 = vmul.f32 %v596, %v598
    %v600 = vadd.f32 %v596, %v599
    %vm601 = vweird.f32 %v595
    %vm602 = vweird.f32 %v596
    %vm603 = vmor %vm601, %vm602
    %v604 = vsel %vm603, %v596, %v600
    %v605 = vand.u32 2147483647, %v595
    %vm606 = vcmp.eq.f32.partialorder %v605, 8.507059e+37
    %v607 = vand.u32 %v595, 2147483648
    %v608 = vor.u32 1.1754944e-38, %v607
    %v609 = vsel %vm606, %v608, %v604
    %v610 = vmul.f32 1.0, %v609
    %v611 = vtanh.pop %v591
    %v612 = vmul.f32 %v610, %v547
    %614 = vrot.lane.b32.xlu0 %v611, 64
    %v615 = vpop.permute.xlu0 %614
    %v617 = vmul.f32 %v610, %v615
    %619 = vrot.lane.b32.xlu0 %v617, 32
    %v620 = vpop.permute.xlu0 %619
    %v622 = vadd.f32 %v612, %v620
    %v623 = vtanh.pop %v622
    %625 = vrot.lane.b32.xlu0 %v623, 64
    %v626 = vpop.permute.xlu0 %625
    %v628 = vmul.f32 %v610, %v626
    %v629 = vpack.c.bf16 %v628, %v628
    %631 = vrot.lane.b32.xlu0 %v629, 32
    %v632 = vpop.permute.xlu0 %631
    %v634 = vsel %vm182, %v632, 0
    %636 = vmatpush.bf16.msra.mxu0 0
    %637 = vmatpush.bf16.msra.mxu0 0
    %638 = vmatpush.bf16.msra.mxu0 0
    %639 = vmatpush.bf16.msra.mxu0 0
    %640 = vmatpush.bf16.msra.mxu0 0
    %641 = vmatpush.bf16.msra.mxu0 0
    %642 = vmatpush.bf16.msra.mxu0 %v331
    %643 = vmatpush.bf16.msra.mxu0 %v330
    %644 = vmatmul.bf16.gmra.mxu0 %v634
    %v645 = vpop.f32.mrf.mxu0
    %v646 = vadd.f32 %v242, %v645
    %v647 = vpop.f32.mrf.mxu0
    %648 = vdwg.mxu0
    %s649 = scalar_lea.vmem [#allocation16], 32
    %650 = vst [vmem:[%s649] sm:$0xff] %v646
    %s651 = scalar_lea.vmem [#allocation2], 40
    %v652 = vld [vmem:[%s651] sm:$0xff]
    %653 = vmatpush.bf16.msra.mxu0 0
    %654 = vmatpush.bf16.msra.mxu0 0
    %655 = vmatpush.bf16.msra.mxu0 0
    %656 = vmatpush.bf16.msra.mxu0 0
    %657 = vmatpush.bf16.msra.mxu0 0
    %658 = vmatpush.bf16.msra.mxu0 0
    %659 = vmatpush.bf16.msra.mxu0 %v257
    %660 = vmatpush.bf16.msra.mxu0 %v256
    %661 = vmatmul.bf16.gmra.mxu0 %v634
    %v662 = vpop.f32.mrf.mxu0
    %v663 = vadd.f32 0.0, %v662
    %v664 = vpop.f32.mrf.mxu0
    %665 = vdwg.mxu0
    %v666 = vadd.f32 %v652, %v663
    %v667 = vxor.u32 %v666, 2147483648
    %v668 = vmul.f32 %v667, 1.442695
    %v669 = vpow.pop %v668
    %v670 = vadd.f32 %v669, 1.0
    %v671 = vrcp.pop %v670
    %v672 = vmul.f32 %v670, %v671
    %v673 = vsub.f32 1.0, %v672
    %v674 = vmul.f32 %v671, %v673
    %v675 = vadd.f32 %v671, %v674
    %vm676 = vweird.f32 %v670
    %vm677 = vweird.f32 %v671
    %vm678 = vmor %vm676, %vm677
    %v679 = vsel %vm678, %v671, %v675
    %v680 = vand.u32 2147483647, %v670
    %vm681 = vcmp.eq.f32.partialorder %v680, 8.507059e+37
    %v682 = vand.u32 %v670, 2147483648
    %v683 = vor.u32 1.1754944e-38, %v682
    %v684 = vsel %vm681, %v683, %v679
    %v685 = vmul.f32 1.0, %v684
    %v686 = vtanh.pop %v666
    %v687 = vmul.f32 %v685, %v622
    %689 = vrot.lane.b32.xlu0 %v686, 64
    %v690 = vpop.permute.xlu0 %689
    %v692 = vmul.f32 %v685, %v690
    %694 = vrot.lane.b32.xlu0 %v692, 32
    %v695 = vpop.permute.xlu0 %694
    %v697 = vadd.f32 %v687, %v695
    %v698 = vtanh.pop %v697
    %700 = vrot.lane.b32.xlu0 %v698, 64
    %v701 = vpop.permute.xlu0 %700
    %v703 = vmul.f32 %v685, %v701
    %v704 = vpack.c.bf16 %v703, %v703
    %706 = vrot.lane.b32.xlu0 %v704, 32
    %v707 = vpop.permute.xlu0 %706
    %v709 = vsel %vm182, %v707, 0
    %711 = vmatpush.bf16.msra.mxu0 0
    %712 = vmatpush.bf16.msra.mxu0 0
    %713 = vmatpush.bf16.msra.mxu0 0
    %714 = vmatpush.bf16.msra.mxu0 0
    %715 = vmatpush.bf16.msra.mxu0 0
    %716 = vmatpush.bf16.msra.mxu0 0
    %717 = vmatpush.bf16.msra.mxu0 %v331
    %718 = vmatpush.bf16.msra.mxu0 %v330
    %719 = vmatmul.bf16.gmra.mxu0 %v709
    %v720 = vpop.f32.mrf.mxu0
    %v721 = vadd.f32 %v242, %v720
    %v722 = vpop.f32.mrf.mxu0
    %723 = vdwg.mxu0
    %s724 = scalar_lea.vmem [#allocation16], 40
    %725 = vst [vmem:[%s724] sm:$0xff] %v721
    %s726 = scalar_lea.vmem [#allocation2], 48
    %v727 = vld [vmem:[%s726] sm:$0xff]
    %728 = vmatpush.bf16.msra.mxu0 0
    %729 = vmatpush.bf16.msra.mxu0 0
    %730 = vmatpush.bf16.msra.mxu0 0
    %731 = vmatpush.bf16.msra.mxu0 0
    %732 = vmatpush.bf16.msra.mxu0 0
    %733 = vmatpush.bf16.msra.mxu0 0
    %734 = vmatpush.bf16.msra.mxu0 %v257
    %735 = vmatpush.bf16.msra.mxu0 %v256
    %736 = vmatmul.bf16.gmra.mxu0 %v709
    %v737 = vpop.f32.mrf.mxu0
    %v738 = vadd.f32 0.0, %v737
    %v739 = vpop.f32.mrf.mxu0
    %740 = vdwg.mxu0
    %v741 = vadd.f32 %v727, %v738
    %v742 = vxor.u32 %v741, 2147483648
    %v743 = vmul.f32 %v742, 1.442695
    %v744 = vpow.pop %v743
    %v745 = vadd.f32 %v744, 1.0
    %v746 = vrcp.pop %v745
    %v747 = vmul.f32 %v745, %v746
    %v748 = vsub.f32 1.0, %v747
    %v749 = vmul.f32 %v746, %v748
    %v750 = vadd.f32 %v746, %v749
    %vm751 = vweird.f32 %v745
    %vm752 = vweird.f32 %v746
    %vm753 = vmor %vm751, %vm752
    %v754 = vsel %vm753, %v746, %v750
    %v755 = vand.u32 2147483647, %v745
    %vm756 = vcmp.eq.f32.partialorder %v755, 8.507059e+37
    %v757 = vand.u32 %v745, 2147483648
    %v758 = vor.u32 1.1754944e-38, %v757
    %v759 = vsel %vm756, %v758, %v754
    %v760 = vmul.f32 1.0, %v759
    %v761 = vtanh.pop %v741
    %v762 = vmul.f32 %v760, %v697
    %764 = vrot.lane.b32.xlu0 %v761, 64
    %v765 = vpop.permute.xlu0 %764
    %v767 = vmul.f32 %v760, %v765
    %769 = vrot.lane.b32.xlu0 %v767, 32
    %v770 = vpop.permute.xlu0 %769
    %v772 = vadd.f32 %v762, %v770
    %v773 = vtanh.pop %v772
    %775 = vrot.lane.b32.xlu0 %v773, 64
    %v776 = vpop.permute.xlu0 %775
    %v778 = vmul.f32 %v760, %v776
    %v779 = vpack.c.bf16 %v778, %v778
    %781 = vrot.lane.b32.xlu0 %v779, 32
    %v782 = vpop.permute.xlu0 %781
    %v784 = vsel %vm182, %v782, 0
    %786 = vmatpush.bf16.msra.mxu0 0
    %787 = vmatpush.bf16.msra.mxu0 0
    %788 = vmatpush.bf16.msra.mxu0 0
    %789 = vmatpush.bf16.msra.mxu0 0
    %790 = vmatpush.bf16.msra.mxu0 0
    %791 = vmatpush.bf16.msra.mxu0 0
    %792 = vmatpush.bf16.msra.mxu0 %v331
    %793 = vmatpush.bf16.msra.mxu0 %v330
    %794 = vmatmul.bf16.gmra.mxu0 %v784
    %v795 = vpop.f32.mrf.mxu0
    %v796 = vadd.f32 %v242, %v795
    %v797 = vpop.f32.mrf.mxu0
    %798 = vdwg.mxu0
    %s799 = scalar_lea.vmem [#allocation16], 48
    %800 = vst [vmem:[%s799] sm:$0xff] %v796
    %s801 = scalar_lea.vmem [#allocation2], 56
    %v802 = vld [vmem:[%s801] sm:$0xff]
    %803 = vmatpush.bf16.msra.mxu0 0
    %804 = vmatpush.bf16.msra.mxu0 0
    %805 = vmatpush.bf16.msra.mxu0 0
    %806 = vmatpush.bf16.msra.mxu0 0
    %807 = vmatpush.bf16.msra.mxu0 0
    %808 = vmatpush.bf16.msra.mxu0 0
    %809 = vmatpush.bf16.msra.mxu0 %v257
    %810 = vmatpush.bf16.msra.mxu0 %v256
    %811 = vmatmul.bf16.gmra.mxu0 %v784
    %v812 = vpop.f32.mrf.mxu0
    %v813 = vadd.f32 0.0, %v812
    %v814 = vpop.f32.mrf.mxu0
    %815 = vdwg.mxu0
    %v816 = vadd.f32 %v802, %v813
    %v817 = vxor.u32 %v816, 2147483648
    %v818 = vmul.f32 %v817, 1.442695
    %v819 = vpow.pop %v818
    %v820 = vadd.f32 %v819, 1.0
    %v821 = vrcp.pop %v820
    %v822 = vmul.f32 %v820, %v821
    %v823 = vsub.f32 1.0, %v822
    %v824 = vmul.f32 %v821, %v823
    %v825 = vadd.f32 %v821, %v824
    %vm826 = vweird.f32 %v820
    %vm827 = vweird.f32 %v821
    %vm828 = vmor %vm826, %vm827
    %v829 = vsel %vm828, %v821, %v825
    %v830 = vand.u32 2147483647, %v820
    %vm831 = vcmp.eq.f32.partialorder %v830, 8.507059e+37
    %v832 = vand.u32 %v820, 2147483648
    %v833 = vor.u32 1.1754944e-38, %v832
    %v834 = vsel %vm831, %v833, %v829
    %v835 = vmul.f32 1.0, %v834
    %v836 = vtanh.pop %v816
    %v837 = vmul.f32 %v835, %v772
    %839 = vrot.lane.b32.xlu0 %v836, 64
    %v840 = vpop.permute.xlu0 %839
    %v842 = vmul.f32 %v835, %v840
    %844 = vrot.lane.b32.xlu0 %v842, 32
    %v845 = vpop.permute.xlu0 %844
    %v847 = vadd.f32 %v837, %v845
    %v848 = vtanh.pop %v847
    %850 = vrot.lane.b32.xlu0 %v848, 64
    %v851 = vpop.permute.xlu0 %850
    %v853 = vmul.f32 %v835, %v851
    %v854 = vpack.c.bf16 %v853, %v853
    %856 = vrot.lane.b32.xlu0 %v854, 32
    %v857 = vpop.permute.xlu0 %856
    %v859 = vsel %vm182, %v857, 0
    %861 = vmatpush.bf16.msra.mxu0 0
    %862 = vmatpush.bf16.msra.mxu0 0
    %863 = vmatpush.bf16.msra.mxu0 0
    %864 = vmatpush.bf16.msra.mxu0 0
    %865 = vmatpush.bf16.msra.mxu0 0
    %866 = vmatpush.bf16.msra.mxu0 0
    %867 = vmatpush.bf16.msra.mxu0 %v331
    %868 = vmatpush.bf16.msra.mxu0 %v330
    %869 = vmatmul.bf16.gmra.mxu0 %v859
    %v870 = vpop.f32.mrf.mxu0
    %v871 = vadd.f32 %v242, %v870
    %v872 = vpop.f32.mrf.mxu0
    %873 = vdwg.mxu0
    %s874 = scalar_lea.vmem [#allocation16], 56
    %875 = vst [vmem:[%s874] sm:$0xff] %v871
    %877 = vrot.lane.b32.xlu0 %v853, 32
    %v878 = vpop.permute.xlu0 %877
    %880 = vst.msk [vmem:[#allocation3] sm:$0xff] %vm182, %v878
    %882 = vrot.lane.b32.xlu0 %v847, 96
    %v883 = vpop.permute.xlu0 %882
    %885 = vst.msk [vmem:[#allocation4] sm:$0xff] %vm182, %v883
    %886 = vst.msk [vmem:[#allocation17] sm:$0xff] %vm182, %v878
    %887 = vst.msk [vmem:[#allocation19] sm:$0xff] %vm182, %v883
    // Predicated region
    $region62: #{tpu_custom_call.1} parent=1 // pred_check
      _
    $region63: #{tpu_custom_call.1} parent=1 // pred_check_branch
      %889 = sbr.rel (0) target = $region65
    $region64: #{tpu_custom_call.1} parent=1 // pred_region
      %891 = vsyncadd [#allocation7], 0
      %s892 = sshll.u32 [#allocation16], 4
      %s893 = int_to_ptr.vmem [resolvable:$true] %s892
      %s894 = sshll.u32 %s8, 4
      %s895 = int_to_ptr.hbm [resolvable:$true] %s894
      %900 = dma.vmem_to_hbm [thread:$0]  %s893, 1024, %s895, [#allocation7], 128, 128, 8
    $region65: #{tpu_custom_call.1} parent=1 // pred_fallthru
      _
    // Predicated region
    $region66: #{tpu_custom_call.1} parent=1 // pred_check
      _
    $region67: #{tpu_custom_call.1} parent=1 // pred_check_branch
      %902 = sbr.rel (0) target = $region69
    $region68: #{tpu_custom_call.1} parent=1 // pred_region
      %904 = vsyncadd [#allocation18], 0
      %s906 = sshll.u32 [#allocation17], 4
      %s907 = int_to_ptr.vmem [resolvable:$true] %s906
      %s908 = sshll.u32 %s9, 4
      %s909 = int_to_ptr.hbm [resolvable:$true] %s908
      %911 = dma.vmem_to_hbm [thread:$0]  %s907, 128, %s909, [#allocation18]
    $region69: #{tpu_custom_call.1} parent=1 // pred_fallthru
      _
    // Predicated region
    $region70: #{tpu_custom_call.1} parent=1 // pred_check
      _
    $region71: #{tpu_custom_call.1} parent=1 // pred_check_branch
      %913 = sbr.rel (0) target = $region73
    $region72: #{tpu_custom_call.1} parent=1 // pred_region
      %915 = vsyncadd [#allocation18], 0
      %s917 = sshll.u32 [#allocation19], 4
      %s918 = int_to_ptr.vmem [resolvable:$true] %s917
      %s919 = sshll.u32 %s10, 4
      %s920 = int_to_ptr.hbm [resolvable:$true] %s919
      %922 = dma.vmem_to_hbm [thread:$0]  %s918, 128, %s920, [#allocation18]
    $region73: #{tpu_custom_call.1} parent=1 // pred_fallthru
      _
    // Predicated region
    $region74: #{tpu_custom_call.1} parent=1 // pred_check
      _
    $region75: #{tpu_custom_call.1} parent=1 // pred_check_branch
      %924 = sbr.rel (0) target = $region77
    $region76: #{tpu_custom_call.1} parent=1 // pred_region
      %926 = dma.done [#allocation7], 1024
    $region77: #{tpu_custom_call.1} parent=1 // pred_fallthru
      _
    // Predicated region
    $region78: #{tpu_custom_call.1} parent=1 // pred_check
      _
    $region79: #{tpu_custom_call.1} parent=1 // pred_check_branch
      %928 = sbr.rel (0) target = $region81
    $region80: #{tpu_custom_call.1} parent=1 // pred_region
      %930 = dma.done [#allocation18], 128
    $region81: #{tpu_custom_call.1} parent=1 // pred_fallthru
      _
    // Predicated region
    $region82: #{tpu_custom_call.1} parent=1 // pred_check
      _
    $region83: #{tpu_custom_call.1} parent=1 // pred_check_branch
      %932 = sbr.rel (0) target = $region85
    $region84: #{tpu_custom_call.1} parent=1 // pred_region
      %934 = dma.done [#allocation18], 128
    $region85: #{tpu_custom_call.1} parent=1 // pred_fallthru
      _
    %935 = vsyncpa [#allocation6], 1
    %936 = vsyncpa [#allocation9], 1
    %937 = vsyncpa [#allocation12], 1
    %938 = vsyncpa [#allocation15], 1
    %939 = vsyncpa [#allocation7], 1
    %940 = vsyncpa [#allocation18], 1

</llo_original>
